<compile_context>
chip_gen: v5e
topology: v5e:2x2
jax: 0.10.0
libtpu: 0.0.40
codegen_flags: <defaults>
</compile_context>

<pallas_src>
import functools
import math

import numpy as np
import jax
import jax.numpy as jnp
from jax.experimental import pallas as pl
from jax.experimental.pallas import tpu as pltpu


# ----------------------------------------------------------------------------
# Bicubic interpolation matrices (PyTorch semantics: align_corners=False, A=-0.75)
# ----------------------------------------------------------------------------
def _cubic1(x, A=-0.75):
    return ((A + 2.0) * x - (A + 3.0)) * x * x + 1.0


def _cubic2(x, A=-0.75):
    return ((A * x - 5.0 * A) * x + 8.0 * A) * x - 4.0 * A


def bicubic_matrix(in_size: int, out_size: int) -> np.ndarray:
    """(out_size, in_size) matrix M such that out = M @ in is 1-D bicubic resize."""
    M = np.zeros((out_size, in_size), dtype=np.float32)
    scale = in_size / out_size
    for i in range(out_size):
        src = (i + 0.5) * scale - 0.5
        f = int(math.floor(src))
        t = src - f
        ws = (_cubic2(t + 1.0), _cubic1(t), _cubic1(1.0 - t), _cubic2(2.0 - t))
        for k in range(4):
            idx = min(max(f - 1 + k, 0), in_size - 1)
            M[i, idx] += ws[k]
    return M


# ----------------------------------------------------------------------------
# Pallas kernels
# ----------------------------------------------------------------------------
def resize_kernel(x_ref, wh_ref, wwt_ref, o_ref):
    """All planes in one grid step.  x_ref: (P, H, W); wh_ref: (Ho, H);
    wwt_ref: (W, Wo) pre-transposed on host; o_ref: (P, Ho, Wo)."""
    wh = wh_ref[...]
    wwt = wwt_ref[...]
    hi = jax.lax.Precision.HIGHEST
    for p in range(x_ref.shape[0]):               # static unroll over N*C planes
        t = jnp.dot(x_ref[p], wwt, precision=hi)  # (H, Wo)
        o_ref[p] = jnp.dot(wh, t, precision=hi)   # (Ho, Wo)


def _conv_block_kernel(k, th, wo, n_stage, relus, *refs):
    """One grid step = (image n, output-row tile i).

    refs = (x_hbm, w0, b0, [w1, b1, ...], o_ref, xbuf, sem)
      x_hbm : (N, Hp, Wp, Cin) spatially pre-padded NHWC activation, bf16, kept in HBM
      w0    : (k, k, Cin, C0p) bf16   (k x k conv taps, Cout zero-padded to 128 lanes)
      b0    : (1, C0p) f32
      ws/bs : (C(s-1)p, Csp) bf16 / (1, Csp) f32   fused trailing 1x1 stages
      o_ref : (1, th, wo, Clastp) output tile (lane-dense)
      xbuf  : (th + k - 1, Wp, Cin) VMEM scratch (halo'd row slab)
      sem   : DMA semaphore
    """
    x_hbm = refs[0]
    wb = refs[1:1 + 2 * n_stage]
    o_ref = refs[1 + 2 * n_stage]
    xbuf = refs[2 + 2 * n_stage]
    sem = refs[3 + 2 * n_stage]

    n = pl.program_id(0)
    i = pl.program_id(1)
    rows = th + k - 1
    row0 = pl.multiple_of(i * th, 8)

    # Output rows [i*th, i*th+th) need padded rows [i*th, i*th+th+k-1): DMA the slab.
    cpy = pltpu.make_async_copy(x_hbm.at[n, pl.ds(row0, rows)], xbuf, sem)
    cpy.start()
    cpy.wait()

    cin = xbuf.shape[-1]
    c0 = wb[0].shape[-1]

    # In-kernel im2col: accumulate over the k*k taps with shifted slices of the slab
    # (no (M, Cin*k*k) patch matrix ever exists in HBM).
    acc = jnp.zeros((th * wo, c0), jnp.float32)
    for dy in range(k):
        for dx in range(k):
            patch = xbuf[dy:dy + th, dx:dx + wo, :].reshape(th * wo, cin)
            acc = acc + jnp.dot(patch, wb[0][dy, dx],
                                preferred_element_type=jnp.float32)
    h = acc + wb[1][...]
    if relus[0]:
        h = jnp.maximum(h, 0.0)

    # Fused trailing 1x1 conv stages consume the row tile while it is resident.
    for s in range(1, n_stage):
        w_s = wb[2 * s]
        h = jnp.dot(h.astype(w_s.dtype), w_s[...],
                    preferred_element_type=jnp.float32) + wb[2 * s + 1][...]
        if relus[s]:
            h = jnp.maximum(h, 0.0)

    o_ref[...] = h.reshape(1, th, wo, h.shape[-1]).astype(o_ref.dtype)


# ----------------------------------------------------------------------------
# Wrappers
# ----------------------------------------------------------------------------
def bicubic_resize(x, upscale_factor: int):
    """PyTorch-style bicubic (align_corners=False, A=-0.75).  NCHW in / NCHW out."""
    N, C, H, W = x.shape
    Ho, Wo = H * upscale_factor, W * upscale_factor
    wh = jnp.asarray(bicubic_matrix(H, Ho))            # (Ho, H)
    wwt = jnp.asarray(bicubic_matrix(W, Wo).T)         # (W, Wo), pre-transposed on host
    xr = x.reshape(N * C, H, W).astype(jnp.float32)
    out = pl.pallas_call(
        resize_kernel,
        out_shape=jax.ShapeDtypeStruct((N * C, Ho, Wo), jnp.float32),
    )(xr, wh, wwt)
    return out.reshape(N, C, Ho, Wo)


def conv_block(x_nhwc, stages, k, pad, out_dtype=jnp.bfloat16, th=None):
    """'same' conv stack on an NHWC activation.  stages = [(w_oihw, b, relu), ...];
    stage 0 is a k x k conv (stride 1, padding=pad), trailing stages must be 1x1 and
    are fused into the same kernel.  Returns (N, H, W, ceil(Cout/128)*128) with the
    real output channels in the leading slots (the rest are exact zeros)."""
    N, H, W, Cin = x_nhwc.shape

    if th is None:                                     # ~512 spatial positions / tile
        th = min(max(8, 512 // max(W, 1)), 256)
    th = ((th + 7) // 8) * 8
    n_h = -(-H // th)
    Hp = n_h * th + k - 1                              # tile-padded + halo'd height
    Wp = W + k - 1
    rows = th + k - 1

    # bf16 activations halve DMA bytes and feed the bf16 MXU path; accumulation is f32.
    xb = jnp.pad(x_nhwc.astype(jnp.bfloat16),
                 ((0, 0), (pad, Hp - H - pad), (pad, k - 1 - pad), (0, 0)))

    packed, relus = [], []
    c_prev_pad = Cin
    for s, (w, b, relu) in enumerate(stages):
        cout = w.shape[0]
        cp_out = ((cout + 127) // 128) * 128           # lane-dense output channels
        if s == 0:
            wq = jnp.transpose(w, (2, 3, 1, 0))        # OIHW -> HWIO
            wq = jnp.pad(wq, ((0, 0), (0, 0),
                              (0, Cin - wq.shape[2]), (0, cp_out - cout)))
        else:
            assert w.shape[2] == 1 and w.shape[3] == 1, "fused stages must be 1x1"
            wq = jnp.transpose(w.reshape(cout, w.shape[1]), (1, 0))
            wq = jnp.pad(wq, ((0, c_prev_pad - w.shape[1]), (0, cp_out - cout)))
        bq = jnp.pad(b.reshape(1, cout).astype(jnp.float32),
                     ((0, 0), (0, cp_out - cout)))
        packed.append((wq.astype(jnp.bfloat16), bq))
        relus.append(bool(relu))
        c_prev_pad = cp_out
    cp_last = c_prev_pad

    in_specs = [pl.BlockSpec(memory_space=pl.ANY)]     # raw ref; row slabs DMA'd manually
    operands = [xb]
    for wq, bq in packed:
        in_specs.append(pl.BlockSpec(wq.shape, lambda n, i, nd=wq.ndim: (0,) * nd))
        in_specs.append(pl.BlockSpec(bq.shape, lambda n, i: (0, 0)))
        operands += [wq, bq]

    # Advisory cost for XLA's scheduler (implicit-GEMM flops + tile traffic).
    m_total = N * n_h * th * W
    flops = 2 * m_total * (k * k * Cin) * packed[0][0].shape[-1]
    for s in range(1, len(packed)):
        flops += 2 * m_total * packed[s][0].shape[0] * packed[s][0].shape[1]
    bytes_acc = int(xb.size * 2 + sum(w.size * 2 + b.size * 4 for w, b in packed)
                    + m_total * cp_last * np.dtype(out_dtype).itemsize)

    out = pl.pallas_call(
        functools.partial(_conv_block_kernel, k, th, W, len(packed), tuple(relus)),
        out_shape=jax.ShapeDtypeStruct((N, n_h * th, W, cp_last), out_dtype),
        grid=(N, n_h),
        in_specs=in_specs,
        out_specs=pl.BlockSpec((1, th, W, cp_last), lambda n, i: (n, i, 0, 0)),
        scratch_shapes=[pltpu.VMEM((rows, Wp, Cin), jnp.bfloat16),
                        pltpu.SemaphoreType.DMA],
        compiler_params=pltpu.CompilerParams(
            dimension_semantics=("parallel", "parallel")),
        cost_estimate=pl.CostEstimate(flops=flops, transcendentals=0,
                                      bytes_accessed=bytes_acc),
    )(*operands)
    return out[:, :H]                                  # crop tile-padded rows


def super_resolution_forward(x, params, upscale_factor: int):
    """x: (N, C, H, W) f32.  upscale_factor: static Python int
    (mirrors `upscale_factor.item()` in the PyTorch forward)."""
    xr = bicubic_resize(x, upscale_factor)                     # (N, C, Ho, Wo) f32
    xh = jnp.transpose(xr, (0, 2, 3, 1))                       # single entry NCHW->NHWC
    h = conv_block(xh,
                   [(params["w1"], params["b1"], True),        # conv1 9x9 + ReLU
                    (params["w2"], params["b2"], True)],       # conv2 1x1 + ReLU (fused)
                   k=9, pad=4, out_dtype=jnp.bfloat16)
    y = conv_block(h,
                   [(params["w3"], params["b3"], False)],      # conv3 5x5
                   k=5, pad=2, out_dtype=jnp.float32)
    y = y[..., :params["w3"].shape[0]]                         # crop lane padding -> 3 ch
    return jnp.transpose(y, (0, 3, 1, 2))                      # single exit NHWC->NCHW


# ----------------------------------------------------------------------------
# References for self-checks
# ----------------------------------------------------------------------------
def _ref_bicubic_numpy(x, scale):
    """Direct (non-separable) per-pixel bicubic, PyTorch semantics
    (align_corners=False, A=-0.75, clamped border taps)."""
    N, C, H, W = x.shape
    Ho, Wo = H * scale, W * scale

    def taps(i, in_size, out_size):
        src = (i + 0.5) * (in_size / out_size) - 0.5
        f = math.floor(src)
        t = src - f
        w = np.array([_cubic2(t + 1.0), _cubic1(t), _cubic1(1.0 - t), _cubic2(2.0 - t)],
                     dtype=np.float64)
        idx = np.clip(np.arange(f - 1, f + 3), 0, in_size - 1)
        return idx, w

    out = np.zeros((N, C, Ho, Wo), dtype=np.float64)
    for i in range(Ho):
        yi, wy = taps(i, H, Ho)
        for j in range(Wo):
            xj, wx = taps(j, W, Wo)
            patch = x[:, :, yi][:, :, :, xj].astype(np.float64)   # (N, C, 4, 4)
            out[:, :, i, j] = np.einsum("ncyx,y,x->nc", patch, wy, wx)
    return out.astype(np.float32)


def _ref_conv(x, w, b, pad):
    y = jax.lax.conv_general_dilated(
        x.astype(jnp.bfloat16), w.astype(jnp.bfloat16),
        window_strides=(1, 1), padding=[(pad, pad), (pad, pad)],
        dimension_numbers=("NCHW", "OIHW", "NCHW"),
        preferred_element_type=jnp.float32)
    return y + b[None, :, None, None]


def _ref_forward(x_resized, params):
    h = jnp.maximum(_ref_conv(x_resized, params["w1"], params["b1"], 4), 0.0)
    h = jnp.maximum(_ref_conv(h, params["w2"], params["b2"], 0), 0.0)
    h = h.astype(jnp.bfloat16).astype(jnp.float32)   # match bf16 round-trip between kernels
    return _ref_conv(h, params["w3"], params["b3"], 2)


# ----------------------------------------------------------------------------
if __name__ == "__main__":
    key = jax.random.PRNGKey(0)
    k_x, k1, k2, k3, kb1, kb2, kb3 = jax.random.split(key, 7)

    N, C, H, W = 1, 3, 16, 16                 # small shapes consistent with the module
    upscale_factor = 2                        # static (PyTorch uses upscale_factor.item())
    x = jax.random.normal(k_x, (N, C, H, W), dtype=jnp.float32)

    params = {
        "w1": 0.05 * jax.random.normal(k1, (64, 3, 9, 9), dtype=jnp.float32),
        "b1": 0.05 * jax.random.normal(kb1, (64,), dtype=jnp.float32),
        "w2": 0.05 * jax.random.normal(k2, (32, 64, 1, 1), dtype=jnp.float32),
        "b2": 0.05 * jax.random.normal(kb2, (32,), dtype=jnp.float32),
        "w3": 0.05 * jax.random.normal(k3, (3, 32, 5, 5), dtype=jnp.float32),
        "b3": 0.05 * jax.random.normal(kb3, (3,), dtype=jnp.float32),
    }

    out = jax.block_until_ready(super_resolution_forward(x, params, upscale_factor))
    assert out.shape == (N, 3, H * upscale_factor, W * upscale_factor), out.shape

    # Check 1: Pallas bicubic vs direct per-pixel PyTorch-semantics reference.
    xr = jax.block_until_ready(bicubic_resize(x, upscale_factor))
    ref_resize = _ref_bicubic_numpy(np.asarray(x), upscale_factor)
    err_r = float(np.max(np.abs(np.asarray(xr) - ref_resize)))
    assert err_r < 1e-2, f"bicubic mismatch vs direct reference: {err_r}"

    # Check 2: Pallas conv stack vs XLA convs with matching bf16 quantization points.
    ref = jax.block_until_ready(_ref_forward(xr, params))
    err_c = float(jnp.max(jnp.abs(out - ref)))
    assert err_c < 2e-2, f"conv stack mismatch vs reference: {err_c}"

    print("KERNEL_OK")
</pallas_src>

<mosaic_0001>
module attributes {stable_mosaic.version = 11 : i64} {
  func.func @resize_kernel(%arg0: memref<3x16x16xf32, #tpu.memory_space<vmem>>, %arg1: memref<32x16xf32, #tpu.memory_space<vmem>>, %arg2: memref<16x32xf32, #tpu.memory_space<vmem>>, %arg3: memref<3x32x32xf32, #tpu.memory_space<vmem>>) attributes {dimension_semantics = [], scalar_prefetch = 0 : i64, scratch_operands = 0 : i64, tpu.core_type = #tpu.core_type<tc>} {
    %c0 = arith.constant 0 : index
    %c0_0 = arith.constant 0 : index
    %0 = vector.load %arg1[%c0, %c0_0] : memref<32x16xf32, #tpu.memory_space<vmem>>, vector<32x16xf32>
    %c0_1 = arith.constant 0 : index
    %c0_2 = arith.constant 0 : index
    %1 = vector.load %arg2[%c0_1, %c0_2] : memref<16x32xf32, #tpu.memory_space<vmem>>, vector<16x32xf32>
    %c0_3 = arith.constant 0 : index
    %c0_4 = arith.constant 0 : index
    %c0_5 = arith.constant 0 : index
    %2 = vector.load %arg0[%c0_3, %c0_4, %c0_5] : memref<3x16x16xf32, #tpu.memory_space<vmem>>, vector<1x16x16xf32>
    %3 = vector.shape_cast %2 : vector<1x16x16xf32> to vector<16x16xf32>
    %cst = arith.constant dense<0.000000e+00> : vector<16x32xf32>
    %4 = tpu.matmul %3, %1, %cst {dimension_numbers = #tpu.dot_dimension_numbers<[1], [0], [0], [1], [0, 0, 1, 1], [], []>, precision = #tpu.contract_precision<fp32>} : vector<16x16xf32>, vector<16x32xf32>, vector<16x32xf32> -> vector<16x32xf32>
    %cst_6 = arith.constant dense<0.000000e+00> : vector<32x32xf32>
    %5 = tpu.matmul %0, %4, %cst_6 {dimension_numbers = #tpu.dot_dimension_numbers<[1], [0], [0], [1], [0, 0, 1, 1], [], []>, precision = #tpu.contract_precision<fp32>} : vector<32x16xf32>, vector<16x32xf32>, vector<32x32xf32> -> vector<32x32xf32>
    %c0_7 = arith.constant 0 : index
    %c0_8 = arith.constant 0 : index
    %c0_9 = arith.constant 0 : index
    %6 = vector.load %arg3[%c0_7, %c0_8, %c0_9] : memref<3x32x32xf32, #tpu.memory_space<vmem>>, vector<1x32x32xf32>
    %7 = vector.shape_cast %6 : vector<1x32x32xf32> to vector<32x32xf32>
    %8 = vector.shape_cast %5 : vector<32x32xf32> to vector<1x32x32xf32>
    tpu.vector_store %arg3[%c0_7, %c0_8, %c0_9], %8 {strides = array<i32>} : memref<3x32x32xf32, #tpu.memory_space<vmem>>, vector<1x32x32xf32>,
    %c1 = arith.constant 1 : index
    %c0_10 = arith.constant 0 : index
    %c0_11 = arith.constant 0 : index
    %9 = vector.load %arg0[%c1, %c0_10, %c0_11] : memref<3x16x16xf32, #tpu.memory_space<vmem>>, vector<1x16x16xf32>
    %10 = vector.shape_cast %9 : vector<1x16x16xf32> to vector<16x16xf32>
    %cst_12 = arith.constant dense<0.000000e+00> : vector<16x32xf32>
    %11 = tpu.matmul %10, %1, %cst_12 {dimension_numbers = #tpu.dot_dimension_numbers<[1], [0], [0], [1], [0, 0, 1, 1], [], []>, precision = #tpu.contract_precision<fp32>} : vector<16x16xf32>, vector<16x32xf32>, vector<16x32xf32> -> vector<16x32xf32>
    %cst_13 = arith.constant dense<0.000000e+00> : vector<32x32xf32>
    %12 = tpu.matmul %0, %11, %cst_13 {dimension_numbers = #tpu.dot_dimension_numbers<[1], [0], [0], [1], [0, 0, 1, 1], [], []>, precision = #tpu.contract_precision<fp32>} : vector<32x16xf32>, vector<16x32xf32>, vector<32x32xf32> -> vector<32x32xf32>
    %c1_14 = arith.constant 1 : index
    %c0_15 = arith.constant 0 : index
    %c0_16 = arith.constant 0 : index
    %13 = vector.load %arg3[%c1_14, %c0_15, %c0_16] : memref<3x32x32xf32, #tpu.memory_space<vmem>>, vector<1x32x32xf32>
    %14 = vector.shape_cast %13 : vector<1x32x32xf32> to vector<32x32xf32>
    %15 = vector.shape_cast %12 : vector<32x32xf32> to vector<1x32x32xf32>
    tpu.vector_store %arg3[%c1_14, %c0_15, %c0_16], %15 {strides = array<i32>} : memref<3x32x32xf32, #tpu.memory_space<vmem>>, vector<1x32x32xf32>,
    %c2 = arith.constant 2 : index
    %c0_17 = arith.constant 0 : index
    %c0_18 = arith.constant 0 : index
    %16 = vector.load %arg0[%c2, %c0_17, %c0_18] : memref<3x16x16xf32, #tpu.memory_space<vmem>>, vector<1x16x16xf32>
    %17 = vector.shape_cast %16 : vector<1x16x16xf32> to vector<16x16xf32>
    %cst_19 = arith.constant dense<0.000000e+00> : vector<16x32xf32>
    %18 = tpu.matmul %17, %1, %cst_19 {dimension_numbers = #tpu.dot_dimension_numbers<[1], [0], [0], [1], [0, 0, 1, 1], [], []>, precision = #tpu.contract_precision<fp32>} : vector<16x16xf32>, vector<16x32xf32>, vector<16x32xf32> -> vector<16x32xf32>
    %cst_20 = arith.constant dense<0.000000e+00> : vector<32x32xf32>
    %19 = tpu.matmul %0, %18, %cst_20 {dimension_numbers = #tpu.dot_dimension_numbers<[1], [0], [0], [1], [0, 0, 1, 1], [], []>, precision = #tpu.contract_precision<fp32>} : vector<32x16xf32>, vector<16x32xf32>, vector<32x32xf32> -> vector<32x32xf32>
    %c2_21 = arith.constant 2 : index
    %c0_22 = arith.constant 0 : index
    %c0_23 = arith.constant 0 : index
    %20 = vector.load %arg3[%c2_21, %c0_22, %c0_23] : memref<3x32x32xf32, #tpu.memory_space<vmem>>, vector<1x32x32xf32>
    %21 = vector.shape_cast %20 : vector<1x32x32xf32> to vector<32x32xf32>
    %22 = vector.shape_cast %19 : vector<32x32xf32> to vector<1x32x32xf32>
    tpu.vector_store %arg3[%c2_21, %c0_22, %c0_23], %22 {strides = array<i32>} : memref<3x32x32xf32, #tpu.memory_space<vmem>>, vector<1x32x32xf32>,
    return
  }
}

</mosaic_0001>

<llo_original>
// kernel: tpu_custom_call.1
$region0: #{tpu_custom_call.1}
  #allocation0 [shape = 'u32[]', space=smem, size = 0x4, offset = 0x4, fixed_abs, tag = 'smem constant byte address 0x4 - core index']
  #allocation1 [shape = 'u32[72,128]{1,0:T(1,128)}', space=vmem, size = 0x9000, scoped, tag = 'internal scratch']
  %s0 = inlined_call_operand.vmem [shape: f32[3,16,16], index: 0, kind: input, shape index: {}]
  %s1 = inlined_call_operand.vmem [shape: f32[32,16], index: 1, kind: input, shape index: {}]
  %s2 = inlined_call_operand.hbm [shape: f32[16,32], index: 2, kind: input, shape index: {}]
  %s3 = inlined_call_operand.hbm [shape: f32[3,32,32], index: 3, kind: output, shape index: {}]
  %s4 = sld [smem:[#allocation0]]
  $region26: #{tpu_custom_call.1} parent=0
    _
  %s6 = ssub.s32 1, %s4
  %s7 = scalar_select 0, %s6, %s4
  $region1: #{tpu_custom_call.1} parent=0
    #allocation2 [shape = 'u8[8192]{0}', space=vmem, size = 0x2000, scoped, tag = 'input window, operand 2, single buffered']
    #allocation3 [shape = 's32[1]{0}', space=sflag, size = 0x4, scoped, tag = 'scoped memory for tpu_custom_call.1']
    #allocation4 [shape = 's32[1]{0}', space=sflag, size = 0x4, scoped, tag = 'scoped memory for tpu_custom_call.1']
    #allocation5 [shape = 'u8[49152]{0}', space=vmem, size = 0xc000, scoped, tag = 'output window, operand 0, single buffered']
    %8 = vsyncpa [#allocation3], 0
    %9 = vsyncpa [#allocation4], 0
    // Predicated region
    $region2: #{tpu_custom_call.1} parent=1 // pred_check
      _
    $region3: #{tpu_custom_call.1} parent=1 // pred_check_branch
      %11 = sbr.rel (0) target = $region5
    $region4: #{tpu_custom_call.1} parent=1 // pred_region
      _
    $region5: #{tpu_custom_call.1} parent=1 // pred_fallthru
      _
    // Predicated region
    $region6: #{tpu_custom_call.1} parent=1 // pred_check
      _
    $region7: #{tpu_custom_call.1} parent=1 // pred_check_branch
      %13 = sbr.rel (0) target = $region9
    $region8: #{tpu_custom_call.1} parent=1 // pred_region
      _
    $region9: #{tpu_custom_call.1} parent=1 // pred_fallthru
      _
    // Predicated region
    $region10: #{tpu_custom_call.1} parent=1 // pred_check
      _
    $region11: #{tpu_custom_call.1} parent=1 // pred_check_branch
      %15 = sbr.rel (0) target = $region13
    $region12: #{tpu_custom_call.1} parent=1 // pred_region
      %17 = vsyncadd [#allocation3], 0
      %s18 = sshll.u32 %s2, 4
      %s19 = int_to_ptr.hbm [resolvable:$true] %s18
      %s20 = sshll.u32 [#allocation2], 4
      %s21 = int_to_ptr.vmem [resolvable:$true] %s20
      %26 = dma.hbm_to_vmem [thread:$0]  %s19, 256, %s21, [#allocation3], 128, 128, 8
    $region13: #{tpu_custom_call.1} parent=1 // pred_fallthru
      _
    // Predicated region
    $region14: #{tpu_custom_call.1} parent=1 // pred_check
      _
    $region15: #{tpu_custom_call.1} parent=1 // pred_check_branch
      %28 = sbr.rel (0) target = $region17
    $region16: #{tpu_custom_call.1} parent=1 // pred_region
      %30 = dma.done [#allocation3], 256
    $region17: #{tpu_custom_call.1} parent=1 // pred_fallthru
      _
    %v31 = vld [vmem:[%s1] sm:$0xff]
    %v32 = vld [vmem:[%s1 + $0x8] sm:$0xff]
    %v33 = vld [vmem:[%s1 + $0x10] sm:$0xff]
    %v34 = vld [vmem:[%s1 + $0x18] sm:$0xff]
    %v35 = vld [vmem:[#allocation2] sm:$0xff]
    %v36 = vld [vmem:[#allocation2 + $0x8] sm:$0xff]
    %v37 = vld [vmem:[%s0] sm:$0xff]
    %v38 = vld [vmem:[%s0 + $0x8] sm:$0xff]
    %vm39 = vcmask 130048
    %v41 = vsel %vm39, %v37, 0
    %v44 = vsel %vm39, %v38, 0
    %46 = vmatpush.msra.mxu0 0.0
    %47 = vmatpush.msra.mxu0 0.0
    %48 = vmatpush.msra.mxu0 0.0
    %49 = vmatpush.msra.mxu0 0.0
    %50 = vmatpush.msra.mxu0 0.0
    %51 = vmatpush.msra.mxu0 0.0
    %52 = vmatpush.msra.mxu0 0.0
    %53 = vmatpush.msra.mxu0 0.0
    %54 = vmatpush.msra.mxu0 0.0
    %55 = vmatpush.msra.mxu0 0.0
    %56 = vmatpush.msra.mxu0 0.0
    %57 = vmatpush.msra.mxu0 0.0
    %58 = vmatpush.msra.mxu0 0.0
    %59 = vmatpush.msra.mxu0 0.0
    %v60 = vand.u32 %v36, 4294901760
    %61 = vmatpush.msra.mxu0 %v60
    %v62 = vand.u32 %v35, 4294901760
    %63 = vmatpush.msra.mxu0 %v62
    %v64 = vand.u32 %v41, 4294901760
    %v65 = vsub.f32 %v41, %v64
    %v66 = vand.u32 %v65, 4294901760
    %v67 = vsub.f32 %v65, %v66
    %v68 = vand.u32 %v67, 4294901760
    %69 = vmatmul.f32.gmra.mxu0 %v68
    %v70 = vpop.f32.mrf.mxu0
    %v71 = vadd.f32 0.0, %v70
    %v72 = vand.u32 %v44, 4294901760
    %v73 = vsub.f32 %v44, %v72
    %v74 = vand.u32 %v73, 4294901760
    %v75 = vsub.f32 %v73, %v74
    %v76 = vand.u32 %v75, 4294901760
    %77 = vmatmul.f32.gmra.mxu0 %v76
    %v78 = vpop.f32.mrf.mxu0
    %v79 = vadd.f32 0.0, %v78
    %80 = vdwg.mxu0
    %81 = vmatpush.msra.mxu0 0.0
    %82 = vmatpush.msra.mxu0 0.0
    %83 = vmatpush.msra.mxu0 0.0
    %84 = vmatpush.msra.mxu0 0.0
    %85 = vmatpush.msra.mxu0 0.0
    %86 = vmatpush.msra.mxu0 0.0
    %87 = vmatpush.msra.mxu0 0.0
    %88 = vmatpush.msra.mxu0 0.0
    %89 = vmatpush.msra.mxu0 0.0
    %90 = vmatpush.msra.mxu0 0.0
    %91 = vmatpush.msra.mxu0 0.0
    %92 = vmatpush.msra.mxu0 0.0
    %93 = vmatpush.msra.mxu0 0.0
    %94 = vmatpush.msra.mxu0 0.0
    %v95 = vand.u32 %v36, 4294901760
    %v96 = vsub.f32 %v36, %v95
    %v97 = vand.u32 %v96, 4294901760
    %v98 = vsub.f32 %v96, %v97
    %v99 = vand.u32 %v98, 4294901760
    %100 = vmatpush.msra.mxu0 %v99
    %v101 = vand.u32 %v35, 4294901760
    %v102 = vsub.f32 %v35, %v101
    %v103 = vand.u32 %v102, 4294901760
    %v104 = vsub.f32 %v102, %v103
    %v105 = vand.u32 %v104, 4294901760
    %106 = vmatpush.msra.mxu0 %v105
    %v107 = vand.u32 %v41, 4294901760
    %108 = vmatmul.f32.gmra.mxu0 %v107
    %v109 = vpop.f32.mrf.mxu0
    %v110 = vadd.f32 %v71, %v109
    %v111 = vand.u32 %v44, 4294901760
    %112 = vmatmul.f32.gmra.mxu0 %v111
    %v113 = vpop.f32.mrf.mxu0
    %v114 = vadd.f32 %v79, %v113
    %115 = vdwg.mxu0
    %116 = vmatpush.msra.mxu0 0.0
    %117 = vmatpush.msra.mxu0 0.0
    %118 = vmatpush.msra.mxu0 0.0
    %119 = vmatpush.msra.mxu0 0.0
    %120 = vmatpush.msra.mxu0 0.0
    %121 = vmatpush.msra.mxu0 0.0
    %122 = vmatpush.msra.mxu0 0.0
    %123 = vmatpush.msra.mxu0 0.0
    %124 = vmatpush.msra.mxu0 0.0
    %125 = vmatpush.msra.mxu0 0.0
    %126 = vmatpush.msra.mxu0 0.0
    %127 = vmatpush.msra.mxu0 0.0
    %128 = vmatpush.msra.mxu0 0.0
    %129 = vmatpush.msra.mxu0 0.0
    %v130 = vand.u32 %v36, 4294901760
    %v131 = vsub.f32 %v36, %v130
    %132 = vmatpush.msra.mxu0 %v131
    %v133 = vand.u32 %v35, 4294901760
    %v134 = vsub.f32 %v35, %v133
    %135 = vmatpush.msra.mxu0 %v134
    %v136 = vand.u32 %v41, 4294901760
    %v137 = vsub.f32 %v41, %v136
    %138 = vmatmul.f32.gmra.mxu0 %v137
    %v139 = vpop.f32.mrf.mxu0
    %v140 = vadd.f32 %v110, %v139
    %v141 = vand.u32 %v44, 4294901760
    %v142 = vsub.f32 %v44, %v141
    %143 = vmatmul.f32.gmra.mxu0 %v142
    %v144 = vpop.f32.mrf.mxu0
    %v145 = vadd.f32 %v114, %v144
    %146 = vdwg.mxu0
    %147 = vmatpush.msra.mxu0 0.0
    %148 = vmatpush.msra.mxu0 0.0
    %149 = vmatpush.msra.mxu0 0.0
    %150 = vmatpush.msra.mxu0 0.0
    %151 = vmatpush.msra.mxu0 0.0
    %152 = vmatpush.msra.mxu0 0.0
    %153 = vmatpush.msra.mxu0 0.0
    %154 = vmatpush.msra.mxu0 0.0
    %155 = vmatpush.msra.mxu0 0.0
    %156 = vmatpush.msra.mxu0 0.0
    %157 = vmatpush.msra.mxu0 0.0
    %158 = vmatpush.msra.mxu0 0.0
    %159 = vmatpush.msra.mxu0 0.0
    %160 = vmatpush.msra.mxu0 0.0
    %v161 = vand.u32 %v36, 4294901760
    %162 = vmatpush.msra.mxu0 %v161
    %v163 = vand.u32 %v35, 4294901760
    %164 = vmatpush.msra.mxu0 %v163
    %v165 = vand.u32 %v41, 4294901760
    %v166 = vsub.f32 %v41, %v165
    %v167 = vand.u32 %v166, 4294901760
    %168 = vmatmul.f32.gmra.mxu0 %v167
    %v169 = vpop.f32.mrf.mxu0
    %v170 = vadd.f32 %v140, %v169
    %v171 = vand.u32 %v44, 4294901760
    %v172 = vsub.f32 %v44, %v171
    %v173 = vand.u32 %v172, 4294901760
    %174 = vmatmul.f32.gmra.mxu0 %v173
    %v175 = vpop.f32.mrf.mxu0
    %v176 = vadd.f32 %v145, %v175
    %177 = vdwg.mxu0
    %178 = vmatpush.msra.mxu0 0.0
    %179 = vmatpush.msra.mxu0 0.0
    %180 = vmatpush.msra.mxu0 0.0
    %181 = vmatpush.msra.mxu0 0.0
    %182 = vmatpush.msra.mxu0 0.0
    %183 = vmatpush.msra.mxu0 0.0
    %184 = vmatpush.msra.mxu0 0.0
    %185 = vmatpush.msra.mxu0 0.0
    %186 = vmatpush.msra.mxu0 0.0
    %187 = vmatpush.msra.mxu0 0.0
    %188 = vmatpush.msra.mxu0 0.0
    %189 = vmatpush.msra.mxu0 0.0
    %190 = vmatpush.msra.mxu0 0.0
    %191 = vmatpush.msra.mxu0 0.0
    %v192 = vand.u32 %v36, 4294901760
    %v193 = vsub.f32 %v36, %v192
    %v194 = vand.u32 %v193, 4294901760
    %195 = vmatpush.msra.mxu0 %v194
    %v196 = vand.u32 %v35, 4294901760
    %v197 = vsub.f32 %v35, %v196
    %v198 = vand.u32 %v197, 4294901760
    %199 = vmatpush.msra.mxu0 %v198
    %v200 = vand.u32 %v41, 4294901760
    %201 = vmatmul.f32.gmra.mxu0 %v200
    %v202 = vpop.f32.mrf.mxu0
    %v203 = vadd.f32 %v170, %v202
    %v204 = vand.u32 %v44, 4294901760
    %205 = vmatmul.f32.gmra.mxu0 %v204
    %v206 = vpop.f32.mrf.mxu0
    %v207 = vadd.f32 %v176, %v206
    %208 = vdwg.mxu0
    %209 = vmatpush.msra.mxu0 0.0
    %210 = vmatpush.msra.mxu0 0.0
    %211 = vmatpush.msra.mxu0 0.0
    %212 = vmatpush.msra.mxu0 0.0
    %213 = vmatpush.msra.mxu0 0.0
    %214 = vmatpush.msra.mxu0 0.0
    %215 = vmatpush.msra.mxu0 0.0
    %216 = vmatpush.msra.mxu0 0.0
    %217 = vmatpush.msra.mxu0 0.0
    %218 = vmatpush.msra.mxu0 0.0
    %219 = vmatpush.msra.mxu0 0.0
    %220 = vmatpush.msra.mxu0 0.0
    %221 = vmatpush.msra.mxu0 0.0
    %222 = vmatpush.msra.mxu0 0.0
    %v223 = vand.u32 %v36, 4294901760
    %224 = vmatpush.msra.mxu0 %v223
    %v225 = vand.u32 %v35, 4294901760
    %226 = vmatpush.msra.mxu0 %v225
    %v227 = vand.u32 %v41, 4294901760
    %228 = vmatmul.f32.gmra.mxu0 %v227
    %v229 = vpop.f32.mrf.mxu0
    %v230 = vadd.f32 %v203, %v229
    %v231 = vand.u32 %v44, 4294901760
    %232 = vmatmul.f32.gmra.mxu0 %v231
    %v233 = vpop.f32.mrf.mxu0
    %v234 = vadd.f32 %v207, %v233
    %235 = vdwg.mxu0
    %v237 = vsel %vm39, %v31, 0
    %v240 = vsel %vm39, %v32, 0
    %v243 = vsel %vm39, %v33, 0
    %v246 = vsel %vm39, %v34, 0
    %248 = vmatpush.msra.mxu0 0.0
    %249 = vmatpush.msra.mxu0 0.0
    %250 = vmatpush.msra.mxu0 0.0
    %251 = vmatpush.msra.mxu0 0.0
    %252 = vmatpush.msra.mxu0 0.0
    %253 = vmatpush.msra.mxu0 0.0
    %254 = vmatpush.msra.mxu0 0.0
    %255 = vmatpush.msra.mxu0 0.0
    %256 = vmatpush.msra.mxu0 0.0
    %257 = vmatpush.msra.mxu0 0.0
    %258 = vmatpush.msra.mxu0 0.0
    %259 = vmatpush.msra.mxu0 0.0
    %260 = vmatpush.msra.mxu0 0.0
    %261 = vmatpush.msra.mxu0 0.0
    %v262 = vand.u32 %v234, 4294901760
    %263 = vmatpush.msra.mxu0 %v262
    %v264 = vand.u32 %v230, 4294901760
    %265 = vmatpush.msra.mxu0 %v264
    %v266 = vand.u32 %v237, 4294901760
    %v267 = vsub.f32 %v237, %v266
    %v268 = vand.u32 %v267, 4294901760
    %v269 = vsub.f32 %v267, %v268
    %v270 = vand.u32 %v269, 4294901760
    %271 = vmatmul.f32.gmra.mxu0 %v270
    %v272 = vpop.f32.mrf.mxu0
    %v273 = vadd.f32 0.0, %v272
    %v274 = vand.u32 %v240, 4294901760
    %v275 = vsub.f32 %v240, %v274
    %v276 = vand.u32 %v275, 4294901760
    %v277 = vsub.f32 %v275, %v276
    %v278 = vand.u32 %v277, 4294901760
    %279 = vmatmul.f32.gmra.mxu0 %v278
    %v280 = vpop.f32.mrf.mxu0
    %v281 = vadd.f32 0.0, %v280
    %v282 = vand.u32 %v243, 4294901760
    %v283 = vsub.f32 %v243, %v282
    %v284 = vand.u32 %v283, 4294901760
    %v285 = vsub.f32 %v283, %v284
    %v286 = vand.u32 %v285, 4294901760
    %287 = vmatmul.f32.gmra.mxu0 %v286
    %v288 = vpop.f32.mrf.mxu0
    %v289 = vadd.f32 0.0, %v288
    %v290 = vand.u32 %v246, 4294901760
    %v291 = vsub.f32 %v246, %v290
    %v292 = vand.u32 %v291, 4294901760
    %v293 = vsub.f32 %v291, %v292
    %v294 = vand.u32 %v293, 4294901760
    %295 = vmatmul.f32.gmra.mxu0 %v294
    %v296 = vpop.f32.mrf.mxu0
    %v297 = vadd.f32 0.0, %v296
    %298 = vdwg.mxu0
    %299 = vmatpush.msra.mxu0 0.0
    %300 = vmatpush.msra.mxu0 0.0
    %301 = vmatpush.msra.mxu0 0.0
    %302 = vmatpush.msra.mxu0 0.0
    %303 = vmatpush.msra.mxu0 0.0
    %304 = vmatpush.msra.mxu0 0.0
    %305 = vmatpush.msra.mxu0 0.0
    %306 = vmatpush.msra.mxu0 0.0
    %307 = vmatpush.msra.mxu0 0.0
    %308 = vmatpush.msra.mxu0 0.0
    %309 = vmatpush.msra.mxu0 0.0
    %310 = vmatpush.msra.mxu0 0.0
    %311 = vmatpush.msra.mxu0 0.0
    %312 = vmatpush.msra.mxu0 0.0
    %v313 = vand.u32 %v234, 4294901760
    %v314 = vsub.f32 %v234, %v313
    %v315 = vand.u32 %v314, 4294901760
    %v316 = vsub.f32 %v314, %v315
    %v317 = vand.u32 %v316, 4294901760
    %318 = vmatpush.msra.mxu0 %v317
    %v319 = vand.u32 %v230, 4294901760
    %v320 = vsub.f32 %v230, %v319
    %v321 = vand.u32 %v320, 4294901760
    %v322 = vsub.f32 %v320, %v321
    %v323 = vand.u32 %v322, 4294901760
    %324 = vmatpush.msra.mxu0 %v323
    %v325 = vand.u32 %v237, 4294901760
    %326 = vmatmul.f32.gmra.mxu0 %v325
    %v327 = vpop.f32.mrf.mxu0
    %v328 = vadd.f32 %v273, %v327
    %v329 = vand.u32 %v240, 4294901760
    %330 = vmatmul.f32.gmra.mxu0 %v329
    %v331 = vpop.f32.mrf.mxu0
    %v332 = vadd.f32 %v281, %v331
    %v333 = vand.u32 %v243, 4294901760
    %334 = vmatmul.f32.gmra.mxu0 %v333
    %v335 = vpop.f32.mrf.mxu0
    %v336 = vadd.f32 %v289, %v335
    %v337 = vand.u32 %v246, 4294901760
    %338 = vmatmul.f32.gmra.mxu0 %v337
    %v339 = vpop.f32.mrf.mxu0
    %v340 = vadd.f32 %v297, %v339
    %341 = vdwg.mxu0
    %342 = vmatpush.msra.mxu0 0.0
    %343 = vmatpush.msra.mxu0 0.0
    %344 = vmatpush.msra.mxu0 0.0
    %345 = vmatpush.msra.mxu0 0.0
    %346 = vmatpush.msra.mxu0 0.0
    %347 = vmatpush.msra.mxu0 0.0
    %348 = vmatpush.msra.mxu0 0.0
    %349 = vmatpush.msra.mxu0 0.0
    %350 = vmatpush.msra.mxu0 0.0
    %351 = vmatpush.msra.mxu0 0.0
    %352 = vmatpush.msra.mxu0 0.0
    %353 = vmatpush.msra.mxu0 0.0
    %354 = vmatpush.msra.mxu0 0.0
    %355 = vmatpush.msra.mxu0 0.0
    %v356 = vand.u32 %v234, 4294901760
    %v357 = vsub.f32 %v234, %v356
    %358 = vmatpush.msra.mxu0 %v357
    %v359 = vand.u32 %v230, 4294901760
    %v360 = vsub.f32 %v230, %v359
    %361 = vmatpush.msra.mxu0 %v360
    %v362 = vand.u32 %v237, 4294901760
    %v363 = vsub.f32 %v237, %v362
    %364 = vmatmul.f32.gmra.mxu0 %v363
    %v365 = vpop.f32.mrf.mxu0
    %v366 = vadd.f32 %v328, %v365
    %v367 = vand.u32 %v240, 4294901760
    %v368 = vsub.f32 %v240, %v367
    %369 = vmatmul.f32.gmra.mxu0 %v368
    %v370 = vpop.f32.mrf.mxu0
    %v371 = vadd.f32 %v332, %v370
    %v372 = vand.u32 %v243, 4294901760
    %v373 = vsub.f32 %v243, %v372
    %374 = vmatmul.f32.gmra.mxu0 %v373
    %v375 = vpop.f32.mrf.mxu0
    %v376 = vadd.f32 %v336, %v375
    %v377 = vand.u32 %v246, 4294901760
    %v378 = vsub.f32 %v246, %v377
    %379 = vmatmul.f32.gmra.mxu0 %v378
    %v380 = vpop.f32.mrf.mxu0
    %v381 = vadd.f32 %v340, %v380
    %382 = vdwg.mxu0
    %383 = vmatpush.msra.mxu0 0.0
    %384 = vmatpush.msra.mxu0 0.0
    %385 = vmatpush.msra.mxu0 0.0
    %386 = vmatpush.msra.mxu0 0.0
    %387 = vmatpush.msra.mxu0 0.0
    %388 = vmatpush.msra.mxu0 0.0
    %389 = vmatpush.msra.mxu0 0.0
    %390 = vmatpush.msra.mxu0 0.0
    %391 = vmatpush.msra.mxu0 0.0
    %392 = vmatpush.msra.mxu0 0.0
    %393 = vmatpush.msra.mxu0 0.0
    %394 = vmatpush.msra.mxu0 0.0
    %395 = vmatpush.msra.mxu0 0.0
    %396 = vmatpush.msra.mxu0 0.0
    %v397 = vand.u32 %v234, 4294901760
    %398 = vmatpush.msra.mxu0 %v397
    %v399 = vand.u32 %v230, 4294901760
    %400 = vmatpush.msra.mxu0 %v399
    %v401 = vand.u32 %v237, 4294901760
    %v402 = vsub.f32 %v237, %v401
    %v403 = vand.u32 %v402, 4294901760
    %404 = vmatmul.f32.gmra.mxu0 %v403
    %v405 = vpop.f32.mrf.mxu0
    %v406 = vadd.f32 %v366, %v405
    %v407 = vand.u32 %v240, 4294901760
    %v408 = vsub.f32 %v240, %v407
    %v409 = vand.u32 %v408, 4294901760
    %410 = vmatmul.f32.gmra.mxu0 %v409
    %v411 = vpop.f32.mrf.mxu0
    %v412 = vadd.f32 %v371, %v411
    %v413 = vand.u32 %v243, 4294901760
    %v414 = vsub.f32 %v243, %v413
    %v415 = vand.u32 %v414, 4294901760
    %416 = vmatmul.f32.gmra.mxu0 %v415
    %v417 = vpop.f32.mrf.mxu0
    %v418 = vadd.f32 %v376, %v417
    %v419 = vand.u32 %v246, 4294901760
    %v420 = vsub.f32 %v246, %v419
    %v421 = vand.u32 %v420, 4294901760
    %422 = vmatmul.f32.gmra.mxu0 %v421
    %v423 = vpop.f32.mrf.mxu0
    %v424 = vadd.f32 %v381, %v423
    %425 = vdwg.mxu0
    %426 = vmatpush.msra.mxu0 0.0
    %427 = vmatpush.msra.mxu0 0.0
    %428 = vmatpush.msra.mxu0 0.0
    %429 = vmatpush.msra.mxu0 0.0
    %430 = vmatpush.msra.mxu0 0.0
    %431 = vmatpush.msra.mxu0 0.0
    %432 = vmatpush.msra.mxu0 0.0
    %433 = vmatpush.msra.mxu0 0.0
    %434 = vmatpush.msra.mxu0 0.0
    %435 = vmatpush.msra.mxu0 0.0
    %436 = vmatpush.msra.mxu0 0.0
    %437 = vmatpush.msra.mxu0 0.0
    %438 = vmatpush.msra.mxu0 0.0
    %439 = vmatpush.msra.mxu0 0.0
    %v440 = vand.u32 %v234, 4294901760
    %v441 = vsub.f32 %v234, %v440
    %v442 = vand.u32 %v441, 4294901760
    %443 = vmatpush.msra.mxu0 %v442
    %v444 = vand.u32 %v230, 4294901760
    %v445 = vsub.f32 %v230, %v444
    %v446 = vand.u32 %v445, 4294901760
    %447 = vmatpush.msra.mxu0 %v446
    %v448 = vand.u32 %v237, 4294901760
    %449 = vmatmul.f32.gmra.mxu0 %v448
    %v450 = vpop.f32.mrf.mxu0
    %v451 = vadd.f32 %v406, %v450
    %v452 = vand.u32 %v240, 4294901760
    %453 = vmatmul.f32.gmra.mxu0 %v452
    %v454 = vpop.f32.mrf.mxu0
    %v455 = vadd.f32 %v412, %v454
    %v456 = vand.u32 %v243, 4294901760
    %457 = vmatmul.f32.gmra.mxu0 %v456
    %v458 = vpop.f32.mrf.mxu0
    %v459 = vadd.f32 %v418, %v458
    %v460 = vand.u32 %v246, 4294901760
    %461 = vmatmul.f32.gmra.mxu0 %v460
    %v462 = vpop.f32.mrf.mxu0
    %v463 = vadd.f32 %v424, %v462
    %464 = vdwg.mxu0
    %465 = vmatpush.msra.mxu0 0.0
    %466 = vmatpush.msra.mxu0 0.0
    %467 = vmatpush.msra.mxu0 0.0
    %468 = vmatpush.msra.mxu0 0.0
    %469 = vmatpush.msra.mxu0 0.0
    %470 = vmatpush.msra.mxu0 0.0
    %471 = vmatpush.msra.mxu0 0.0
    %472 = vmatpush.msra.mxu0 0.0
    %473 = vmatpush.msra.mxu0 0.0
    %474 = vmatpush.msra.mxu0 0.0
    %475 = vmatpush.msra.mxu0 0.0
    %476 = vmatpush.msra.mxu0 0.0
    %477 = vmatpush.msra.mxu0 0.0
    %478 = vmatpush.msra.mxu0 0.0
    %v479 = vand.u32 %v234, 4294901760
    %480 = vmatpush.msra.mxu0 %v479
    %v481 = vand.u32 %v230, 4294901760
    %482 = vmatpush.msra.mxu0 %v481
    %v483 = vand.u32 %v237, 4294901760
    %484 = vmatmul.f32.gmra.mxu0 %v483
    %v485 = vpop.f32.mrf.mxu0
    %v486 = vadd.f32 %v451, %v485
    %v487 = vand.u32 %v240, 4294901760
    %488 = vmatmul.f32.gmra.mxu0 %v487
    %v489 = vpop.f32.mrf.mxu0
    %v490 = vadd.f32 %v455, %v489
    %v491 = vand.u32 %v243, 4294901760
    %492 = vmatmul.f32.gmra.mxu0 %v491
    %v493 = vpop.f32.mrf.mxu0
    %v494 = vadd.f32 %v459, %v493
    %v495 = vand.u32 %v246, 4294901760
    %496 = vmatmul.f32.gmra.mxu0 %v495
    %v497 = vpop.f32.mrf.mxu0
    %v498 = vadd.f32 %v463, %v497
    %499 = vdwg.mxu0
    %vm500 = vcmask 261120
    %501 = vst.msk [vmem:[#allocation5] sm:$0xff] %vm500, %v486
    %502 = vst.msk [vmem:[#allocation5 + $0x8] sm:$0xff] %vm500, %v490
    %503 = vst.msk [vmem:[#allocation5 + $0x10] sm:$0xff] %vm500, %v494
    %504 = vst.msk [vmem:[#allocation5 + $0x18] sm:$0xff] %vm500, %v498
    %s505 = scalar_lea.vmem %s0, 16
    %v506 = vld [vmem:[%s505] sm:$0xff]
    %v507 = vld [vmem:[%s505 + $0x8] sm:$0xff]
    %v509 = vsel %vm39, %v506, 0
    %v512 = vsel %vm39, %v507, 0
    %514 = vmatpush.msra.mxu0 0.0
    %515 = vmatpush.msra.mxu0 0.0
    %516 = vmatpush.msra.mxu0 0.0
    %517 = vmatpush.msra.mxu0 0.0
    %518 = vmatpush.msra.mxu0 0.0
    %519 = vmatpush.msra.mxu0 0.0
    %520 = vmatpush.msra.mxu0 0.0
    %521 = vmatpush.msra.mxu0 0.0
    %522 = vmatpush.msra.mxu0 0.0
    %523 = vmatpush.msra.mxu0 0.0
    %524 = vmatpush.msra.mxu0 0.0
    %525 = vmatpush.msra.mxu0 0.0
    %526 = vmatpush.msra.mxu0 0.0
    %527 = vmatpush.msra.mxu0 0.0
    %v528 = vand.u32 %v36, 4294901760
    %529 = vmatpush.msra.mxu0 %v528
    %v530 = vand.u32 %v35, 4294901760
    %531 = vmatpush.msra.mxu0 %v530
    %v532 = vand.u32 %v509, 4294901760
    %v533 = vsub.f32 %v509, %v532
    %v534 = vand.u32 %v533, 4294901760
    %v535 = vsub.f32 %v533, %v534
    %v536 = vand.u32 %v535, 4294901760
    %537 = vmatmul.f32.gmra.mxu0 %v536
    %v538 = vpop.f32.mrf.mxu0
    %v539 = vadd.f32 0.0, %v538
    %v540 = vand.u32 %v512, 4294901760
    %v541 = vsub.f32 %v512, %v540
    %v542 = vand.u32 %v541, 4294901760
    %v543 = vsub.f32 %v541, %v542
    %v544 = vand.u32 %v543, 4294901760
    %545 = vmatmul.f32.gmra.mxu0 %v544
    %v546 = vpop.f32.mrf.mxu0
    %v547 = vadd.f32 0.0, %v546
    %548 = vdwg.mxu0
    %549 = vmatpush.msra.mxu0 0.0
    %550 = vmatpush.msra.mxu0 0.0
    %551 = vmatpush.msra.mxu0 0.0
    %552 = vmatpush.msra.mxu0 0.0
    %553 = vmatpush.msra.mxu0 0.0
    %554 = vmatpush.msra.mxu0 0.0
    %555 = vmatpush.msra.mxu0 0.0
    %556 = vmatpush.msra.mxu0 0.0
    %557 = vmatpush.msra.mxu0 0.0
    %558 = vmatpush.msra.mxu0 0.0
    %559 = vmatpush.msra.mxu0 0.0
    %560 = vmatpush.msra.mxu0 0.0
    %561 = vmatpush.msra.mxu0 0.0
    %562 = vmatpush.msra.mxu0 0.0
    %v563 = vand.u32 %v36, 4294901760
    %v564 = vsub.f32 %v36, %v563
    %v565 = vand.u32 %v564, 4294901760
    %v566 = vsub.f32 %v564, %v565
    %v567 = vand.u32 %v566, 4294901760
    %568 = vmatpush.msra.mxu0 %v567
    %v569 = vand.u32 %v35, 4294901760
    %v570 = vsub.f32 %v35, %v569
    %v571 = vand.u32 %v570, 4294901760
    %v572 = vsub.f32 %v570, %v571
    %v573 = vand.u32 %v572, 4294901760
    %574 = vmatpush.msra.mxu0 %v573
    %v575 = vand.u32 %v509, 4294901760
    %576 = vmatmul.f32.gmra.mxu0 %v575
    %v577 = vpop.f32.mrf.mxu0
    %v578 = vadd.f32 %v539, %v577
    %v579 = vand.u32 %v512, 4294901760
    %580 = vmatmul.f32.gmra.mxu0 %v579
    %v581 = vpop.f32.mrf.mxu0
    %v582 = vadd.f32 %v547, %v581
    %583 = vdwg.mxu0
    %584 = vmatpush.msra.mxu0 0.0
    %585 = vmatpush.msra.mxu0 0.0
    %586 = vmatpush.msra.mxu0 0.0
    %587 = vmatpush.msra.mxu0 0.0
    %588 = vmatpush.msra.mxu0 0.0
    %589 = vmatpush.msra.mxu0 0.0
    %590 = vmatpush.msra.mxu0 0.0
    %591 = vmatpush.msra.mxu0 0.0
    %592 = vmatpush.msra.mxu0 0.0
    %593 = vmatpush.msra.mxu0 0.0
    %594 = vmatpush.msra.mxu0 0.0
    %595 = vmatpush.msra.mxu0 0.0
    %596 = vmatpush.msra.mxu0 0.0
    %597 = vmatpush.msra.mxu0 0.0
    %v598 = vand.u32 %v36, 4294901760
    %v599 = vsub.f32 %v36, %v598
    %600 = vmatpush.msra.mxu0 %v599
    %v601 = vand.u32 %v35, 4294901760
    %v602 = vsub.f32 %v35, %v601
    %603 = vmatpush.msra.mxu0 %v602
    %v604 = vand.u32 %v509, 4294901760
    %v605 = vsub.f32 %v509, %v604
    %606 = vmatmul.f32.gmra.mxu0 %v605
    %v607 = vpop.f32.mrf.mxu0
    %v608 = vadd.f32 %v578, %v607
    %v609 = vand.u32 %v512, 4294901760
    %v610 = vsub.f32 %v512, %v609
    %611 = vmatmul.f32.gmra.mxu0 %v610
    %v612 = vpop.f32.mrf.mxu0
    %v613 = vadd.f32 %v582, %v612
    %614 = vdwg.mxu0
    %615 = vmatpush.msra.mxu0 0.0
    %616 = vmatpush.msra.mxu0 0.0
    %617 = vmatpush.msra.mxu0 0.0
    %618 = vmatpush.msra.mxu0 0.0
    %619 = vmatpush.msra.mxu0 0.0
    %620 = vmatpush.msra.mxu0 0.0
    %621 = vmatpush.msra.mxu0 0.0
    %622 = vmatpush.msra.mxu0 0.0
    %623 = vmatpush.msra.mxu0 0.0
    %624 = vmatpush.msra.mxu0 0.0
    %625 = vmatpush.msra.mxu0 0.0
    %626 = vmatpush.msra.mxu0 0.0
    %627 = vmatpush.msra.mxu0 0.0
    %628 = vmatpush.msra.mxu0 0.0
    %v629 = vand.u32 %v36, 4294901760
    %630 = vmatpush.msra.mxu0 %v629
    %v631 = vand.u32 %v35, 4294901760
    %632 = vmatpush.msra.mxu0 %v631
    %v633 = vand.u32 %v509, 4294901760
    %v634 = vsub.f32 %v509, %v633
    %v635 = vand.u32 %v634, 4294901760
    %636 = vmatmul.f32.gmra.mxu0 %v635
    %v637 = vpop.f32.mrf.mxu0
    %v638 = vadd.f32 %v608, %v637
    %v639 = vand.u32 %v512, 4294901760
    %v640 = vsub.f32 %v512, %v639
    %v641 = vand.u32 %v640, 4294901760
    %642 = vmatmul.f32.gmra.mxu0 %v641
    %v643 = vpop.f32.mrf.mxu0
    %v644 = vadd.f32 %v613, %v643
    %645 = vdwg.mxu0
    %646 = vmatpush.msra.mxu0 0.0
    %647 = vmatpush.msra.mxu0 0.0
    %648 = vmatpush.msra.mxu0 0.0
    %649 = vmatpush.msra.mxu0 0.0
    %650 = vmatpush.msra.mxu0 0.0
    %651 = vmatpush.msra.mxu0 0.0
    %652 = vmatpush.msra.mxu0 0.0
    %653 = vmatpush.msra.mxu0 0.0
    %654 = vmatpush.msra.mxu0 0.0
    %655 = vmatpush.msra.mxu0 0.0
    %656 = vmatpush.msra.mxu0 0.0
    %657 = vmatpush.msra.mxu0 0.0
    %658 = vmatpush.msra.mxu0 0.0
    %659 = vmatpush.msra.mxu0 0.0
    %v660 = vand.u32 %v36, 4294901760
    %v661 = vsub.f32 %v36, %v660
    %v662 = vand.u32 %v661, 4294901760
    %663 = vmatpush.msra.mxu0 %v662
    %v664 = vand.u32 %v35, 4294901760
    %v665 = vsub.f32 %v35, %v664
    %v666 = vand.u32 %v665, 4294901760
    %667 = vmatpush.msra.mxu0 %v666
    %v668 = vand.u32 %v509, 4294901760
    %669 = vmatmul.f32.gmra.mxu0 %v668
    %v670 = vpop.f32.mrf.mxu0
    %v671 = vadd.f32 %v638, %v670
    %v672 = vand.u32 %v512, 4294901760
    %673 = vmatmul.f32.gmra.mxu0 %v672
    %v674 = vpop.f32.mrf.mxu0
    %v675 = vadd.f32 %v644, %v674
    %676 = vdwg.mxu0
    %677 = vmatpush.msra.mxu0 0.0
    %678 = vmatpush.msra.mxu0 0.0
    %679 = vmatpush.msra.mxu0 0.0
    %680 = vmatpush.msra.mxu0 0.0
    %681 = vmatpush.msra.mxu0 0.0
    %682 = vmatpush.msra.mxu0 0.0
    %683 = vmatpush.msra.mxu0 0.0
    %684 = vmatpush.msra.mxu0 0.0
    %685 = vmatpush.msra.mxu0 0.0
    %686 = vmatpush.msra.mxu0 0.0
    %687 = vmatpush.msra.mxu0 0.0
    %688 = vmatpush.msra.mxu0 0.0
    %689 = vmatpush.msra.mxu0 0.0
    %690 = vmatpush.msra.mxu0 0.0
    %v691 = vand.u32 %v36, 4294901760
    %692 = vmatpush.msra.mxu0 %v691
    %v693 = vand.u32 %v35, 4294901760
    %694 = vmatpush.msra.mxu0 %v693
    %v695 = vand.u32 %v509, 4294901760
    %696 = vmatmul.f32.gmra.mxu0 %v695
    %v697 = vpop.f32.mrf.mxu0
    %v698 = vadd.f32 %v671, %v697
    %v699 = vand.u32 %v512, 4294901760
    %700 = vmatmul.f32.gmra.mxu0 %v699
    %v701 = vpop.f32.mrf.mxu0
    %v702 = vadd.f32 %v675, %v701
    %703 = vdwg.mxu0
    %704 = vmatpush.msra.mxu0 0.0
    %705 = vmatpush.msra.mxu0 0.0
    %706 = vmatpush.msra.mxu0 0.0
    %707 = vmatpush.msra.mxu0 0.0
    %708 = vmatpush.msra.mxu0 0.0
    %709 = vmatpush.msra.mxu0 0.0
    %710 = vmatpush.msra.mxu0 0.0
    %711 = vmatpush.msra.mxu0 0.0
    %712 = vmatpush.msra.mxu0 0.0
    %713 = vmatpush.msra.mxu0 0.0
    %714 = vmatpush.msra.mxu0 0.0
    %715 = vmatpush.msra.mxu0 0.0
    %716 = vmatpush.msra.mxu0 0.0
    %717 = vmatpush.msra.mxu0 0.0
    %v718 = vand.u32 %v702, 4294901760
    %719 = vmatpush.msra.mxu0 %v718
    %v720 = vand.u32 %v698, 4294901760
    %721 = vmatpush.msra.mxu0 %v720
    %v722 = vand.u32 %v237, 4294901760
    %v723 = vsub.f32 %v237, %v722
    %v724 = vand.u32 %v723, 4294901760
    %v725 = vsub.f32 %v723, %v724
    %v726 = vand.u32 %v725, 4294901760
    %727 = vmatmul.f32.gmra.mxu0 %v726
    %v728 = vpop.f32.mrf.mxu0
    %v729 = vadd.f32 0.0, %v728
    %v730 = vand.u32 %v240, 4294901760
    %v731 = vsub.f32 %v240, %v730
    %v732 = vand.u32 %v731, 4294901760
    %v733 = vsub.f32 %v731, %v732
    %v734 = vand.u32 %v733, 4294901760
    %735 = vmatmul.f32.gmra.mxu0 %v734
    %v736 = vpop.f32.mrf.mxu0
    %v737 = vadd.f32 0.0, %v736
    %v738 = vand.u32 %v243, 4294901760
    %v739 = vsub.f32 %v243, %v738
    %v740 = vand.u32 %v739, 4294901760
    %v741 = vsub.f32 %v739, %v740
    %v742 = vand.u32 %v741, 4294901760
    %743 = vmatmul.f32.gmra.mxu0 %v742
    %v744 = vpop.f32.mrf.mxu0
    %v745 = vadd.f32 0.0, %v744
    %v746 = vand.u32 %v246, 4294901760
    %v747 = vsub.f32 %v246, %v746
    %v748 = vand.u32 %v747, 4294901760
    %v749 = vsub.f32 %v747, %v748
    %v750 = vand.u32 %v749, 4294901760
    %751 = vmatmul.f32.gmra.mxu0 %v750
    %v752 = vpop.f32.mrf.mxu0
    %v753 = vadd.f32 0.0, %v752
    %754 = vdwg.mxu0
    %755 = vmatpush.msra.mxu0 0.0
    %756 = vmatpush.msra.mxu0 0.0
    %757 = vmatpush.msra.mxu0 0.0
    %758 = vmatpush.msra.mxu0 0.0
    %759 = vmatpush.msra.mxu0 0.0
    %760 = vmatpush.msra.mxu0 0.0
    %761 = vmatpush.msra.mxu0 0.0
    %762 = vmatpush.msra.mxu0 0.0
    %763 = vmatpush.msra.mxu0 0.0
    %764 = vmatpush.msra.mxu0 0.0
    %765 = vmatpush.msra.mxu0 0.0
    %766 = vmatpush.msra.mxu0 0.0
    %767 = vmatpush.msra.mxu0 0.0
    %768 = vmatpush.msra.mxu0 0.0
    %v769 = vand.u32 %v702, 4294901760
    %v770 = vsub.f32 %v702, %v769
    %v771 = vand.u32 %v770, 4294901760
    %v772 = vsub.f32 %v770, %v771
    %v773 = vand.u32 %v772, 4294901760
    %774 = vmatpush.msra.mxu0 %v773
    %v775 = vand.u32 %v698, 4294901760
    %v776 = vsub.f32 %v698, %v775
    %v777 = vand.u32 %v776, 4294901760
    %v778 = vsub.f32 %v776, %v777
    %v779 = vand.u32 %v778, 4294901760
    %780 = vmatpush.msra.mxu0 %v779
    %v781 = vand.u32 %v237, 4294901760
    %782 = vmatmul.f32.gmra.mxu0 %v781
    %v783 = vpop.f32.mrf.mxu0
    %v784 = vadd.f32 %v729, %v783
    %v785 = vand.u32 %v240, 4294901760
    %786 = vmatmul.f32.gmra.mxu0 %v785
    %v787 = vpop.f32.mrf.mxu0
    %v788 = vadd.f32 %v737, %v787
    %v789 = vand.u32 %v243, 4294901760
    %790 = vmatmul.f32.gmra.mxu0 %v789
    %v791 = vpop.f32.mrf.mxu0
    %v792 = vadd.f32 %v745, %v791
    %v793 = vand.u32 %v246, 4294901760
    %794 = vmatmul.f32.gmra.mxu0 %v793
    %v795 = vpop.f32.mrf.mxu0
    %v796 = vadd.f32 %v753, %v795
    %797 = vdwg.mxu0
    %798 = vmatpush.msra.mxu0 0.0
    %799 = vmatpush.msra.mxu0 0.0
    %800 = vmatpush.msra.mxu0 0.0
    %801 = vmatpush.msra.mxu0 0.0
    %802 = vmatpush.msra.mxu0 0.0
    %803 = vmatpush.msra.mxu0 0.0
    %804 = vmatpush.msra.mxu0 0.0
    %805 = vmatpush.msra.mxu0 0.0
    %806 = vmatpush.msra.mxu0 0.0
    %807 = vmatpush.msra.mxu0 0.0
    %808 = vmatpush.msra.mxu0 0.0
    %809 = vmatpush.msra.mxu0 0.0
    %810 = vmatpush.msra.mxu0 0.0
    %811 = vmatpush.msra.mxu0 0.0
    %v812 = vand.u32 %v702, 4294901760
    %v813 = vsub.f32 %v702, %v812
    %814 = vmatpush.msra.mxu0 %v813
    %v815 = vand.u32 %v698, 4294901760
    %v816 = vsub.f32 %v698, %v815
    %817 = vmatpush.msra.mxu0 %v816
    %v818 = vand.u32 %v237, 4294901760
    %v819 = vsub.f32 %v237, %v818
    %820 = vmatmul.f32.gmra.mxu0 %v819
    %v821 = vpop.f32.mrf.mxu0
    %v822 = vadd.f32 %v784, %v821
    %v823 = vand.u32 %v240, 4294901760
    %v824 = vsub.f32 %v240, %v823
    %825 = vmatmul.f32.gmra.mxu0 %v824
    %v826 = vpop.f32.mrf.mxu0
    %v827 = vadd.f32 %v788, %v826
    %v828 = vand.u32 %v243, 4294901760
    %v829 = vsub.f32 %v243, %v828
    %830 = vmatmul.f32.gmra.mxu0 %v829
    %v831 = vpop.f32.mrf.mxu0
    %v832 = vadd.f32 %v792, %v831
    %v833 = vand.u32 %v246, 4294901760
    %v834 = vsub.f32 %v246, %v833
    %835 = vmatmul.f32.gmra.mxu0 %v834
    %v836 = vpop.f32.mrf.mxu0
    %v837 = vadd.f32 %v796, %v836
    %838 = vdwg.mxu0
    %839 = vmatpush.msra.mxu0 0.0
    %840 = vmatpush.msra.mxu0 0.0
    %841 = vmatpush.msra.mxu0 0.0
    %842 = vmatpush.msra.mxu0 0.0
    %843 = vmatpush.msra.mxu0 0.0
    %844 = vmatpush.msra.mxu0 0.0
    %845 = vmatpush.msra.mxu0 0.0
    %846 = vmatpush.msra.mxu0 0.0
    %847 = vmatpush.msra.mxu0 0.0
    %848 = vmatpush.msra.mxu0 0.0
    %849 = vmatpush.msra.mxu0 0.0
    %850 = vmatpush.msra.mxu0 0.0
    %851 = vmatpush.msra.mxu0 0.0
    %852 = vmatpush.msra.mxu0 0.0
    %v853 = vand.u32 %v702, 4294901760
    %854 = vmatpush.msra.mxu0 %v853
    %v855 = vand.u32 %v698, 4294901760
    %856 = vmatpush.msra.mxu0 %v855
    %v857 = vand.u32 %v237, 4294901760
    %v858 = vsub.f32 %v237, %v857
    %v859 = vand.u32 %v858, 4294901760
    %860 = vmatmul.f32.gmra.mxu0 %v859
    %v861 = vpop.f32.mrf.mxu0
    %v862 = vadd.f32 %v822, %v861
    %v863 = vand.u32 %v240, 4294901760
    %v864 = vsub.f32 %v240, %v863
    %v865 = vand.u32 %v864, 4294901760
    %866 = vmatmul.f32.gmra.mxu0 %v865
    %v867 = vpop.f32.mrf.mxu0
    %v868 = vadd.f32 %v827, %v867
    %v869 = vand.u32 %v243, 4294901760
    %v870 = vsub.f32 %v243, %v869
    %v871 = vand.u32 %v870, 4294901760
    %872 = vmatmul.f32.gmra.mxu0 %v871
    %v873 = vpop.f32.mrf.mxu0
    %v874 = vadd.f32 %v832, %v873
    %v875 = vand.u32 %v246, 4294901760
    %v876 = vsub.f32 %v246, %v875
    %v877 = vand.u32 %v876, 4294901760
    %878 = vmatmul.f32.gmra.mxu0 %v877
    %v879 = vpop.f32.mrf.mxu0
    %v880 = vadd.f32 %v837, %v879
    %881 = vdwg.mxu0
    %882 = vmatpush.msra.mxu0 0.0
    %883 = vmatpush.msra.mxu0 0.0
    %884 = vmatpush.msra.mxu0 0.0
    %885 = vmatpush.msra.mxu0 0.0
    %886 = vmatpush.msra.mxu0 0.0
    %887 = vmatpush.msra.mxu0 0.0
    %888 = vmatpush.msra.mxu0 0.0
    %889 = vmatpush.msra.mxu0 0.0
    %890 = vmatpush.msra.mxu0 0.0
    %891 = vmatpush.msra.mxu0 0.0
    %892 = vmatpush.msra.mxu0 0.0
    %893 = vmatpush.msra.mxu0 0.0
    %894 = vmatpush.msra.mxu0 0.0
    %895 = vmatpush.msra.mxu0 0.0
    %v896 = vand.u32 %v702, 4294901760
    %v897 = vsub.f32 %v702, %v896
    %v898 = vand.u32 %v897, 4294901760
    %899 = vmatpush.msra.mxu0 %v898
    %v900 = vand.u32 %v698, 4294901760
    %v901 = vsub.f32 %v698, %v900
    %v902 = vand.u32 %v901, 4294901760
    %903 = vmatpush.msra.mxu0 %v902
    %v904 = vand.u32 %v237, 4294901760
    %905 = vmatmul.f32.gmra.mxu0 %v904
    %v906 = vpop.f32.mrf.mxu0
    %v907 = vadd.f32 %v862, %v906
    %v908 = vand.u32 %v240, 4294901760
    %909 = vmatmul.f32.gmra.mxu0 %v908
    %v910 = vpop.f32.mrf.mxu0
    %v911 = vadd.f32 %v868, %v910
    %v912 = vand.u32 %v243, 4294901760
    %913 = vmatmul.f32.gmra.mxu0 %v912
    %v914 = vpop.f32.mrf.mxu0
    %v915 = vadd.f32 %v874, %v914
    %v916 = vand.u32 %v246, 4294901760
    %917 = vmatmul.f32.gmra.mxu0 %v916
    %v918 = vpop.f32.mrf.mxu0
    %v919 = vadd.f32 %v880, %v918
    %920 = vdwg.mxu0
    %921 = vmatpush.msra.mxu0 0.0
    %922 = vmatpush.msra.mxu0 0.0
    %923 = vmatpush.msra.mxu0 0.0
    %924 = vmatpush.msra.mxu0 0.0
    %925 = vmatpush.msra.mxu0 0.0
    %926 = vmatpush.msra.mxu0 0.0
    %927 = vmatpush.msra.mxu0 0.0
    %928 = vmatpush.msra.mxu0 0.0
    %929 = vmatpush.msra.mxu0 0.0
    %930 = vmatpush.msra.mxu0 0.0
    %931 = vmatpush.msra.mxu0 0.0
    %932 = vmatpush.msra.mxu0 0.0
    %933 = vmatpush.msra.mxu0 0.0
    %934 = vmatpush.msra.mxu0 0.0
    %v935 = vand.u32 %v702, 4294901760
    %936 = vmatpush.msra.mxu0 %v935
    %v937 = vand.u32 %v698, 4294901760
    %938 = vmatpush.msra.mxu0 %v937
    %v939 = vand.u32 %v237, 4294901760
    %940 = vmatmul.f32.gmra.mxu0 %v939
    %v941 = vpop.f32.mrf.mxu0
    %v942 = vadd.f32 %v907, %v941
    %v943 = vand.u32 %v240, 4294901760
    %944 = vmatmul.f32.gmra.mxu0 %v943
    %v945 = vpop.f32.mrf.mxu0
    %v946 = vadd.f32 %v911, %v945
    %v947 = vand.u32 %v243, 4294901760
    %948 = vmatmul.f32.gmra.mxu0 %v947
    %v949 = vpop.f32.mrf.mxu0
    %v950 = vadd.f32 %v915, %v949
    %v951 = vand.u32 %v246, 4294901760
    %952 = vmatmul.f32.gmra.mxu0 %v951
    %v953 = vpop.f32.mrf.mxu0
    %v954 = vadd.f32 %v919, %v953
    %955 = vdwg.mxu0
    %s956 = scalar_lea.vmem [#allocation5], 32
    %957 = vst.msk [vmem:[%s956] sm:$0xff] %vm500, %v942
    %958 = vst.msk [vmem:[%s956 + $0x8] sm:$0xff] %vm500, %v946
    %959 = vst.msk [vmem:[%s956 + $0x10] sm:$0xff] %vm500, %v950
    %960 = vst.msk [vmem:[%s956 + $0x18] sm:$0xff] %vm500, %v954
    %s961 = scalar_lea.vmem %s0, 32
    %v962 = vld [vmem:[%s961] sm:$0xff]
    %v963 = vld [vmem:[%s961 + $0x8] sm:$0xff]
    %v965 = vsel %vm39, %v962, 0
    %v968 = vsel %vm39, %v963, 0
    %970 = vmatpush.msra.mxu0 0.0
    %971 = vmatpush.msra.mxu0 0.0
    %972 = vmatpush.msra.mxu0 0.0
    %973 = vmatpush.msra.mxu0 0.0
    %974 = vmatpush.msra.mxu0 0.0
    %975 = vmatpush.msra.mxu0 0.0
    %976 = vmatpush.msra.mxu0 0.0
    %977 = vmatpush.msra.mxu0 0.0
    %978 = vmatpush.msra.mxu0 0.0
    %979 = vmatpush.msra.mxu0 0.0
    %980 = vmatpush.msra.mxu0 0.0
    %981 = vmatpush.msra.mxu0 0.0
    %982 = vmatpush.msra.mxu0 0.0
    %983 = vmatpush.msra.mxu0 0.0
    %v984 = vand.u32 %v36, 4294901760
    %985 = vmatpush.msra.mxu0 %v984
    %v986 = vand.u32 %v35, 4294901760
    %987 = vmatpush.msra.mxu0 %v986
    %v988 = vand.u32 %v965, 4294901760
    %v989 = vsub.f32 %v965, %v988
    %v990 = vand.u32 %v989, 4294901760
    %v991 = vsub.f32 %v989, %v990
    %v992 = vand.u32 %v991, 4294901760
    %993 = vmatmul.f32.gmra.mxu0 %v992
    %v994 = vpop.f32.mrf.mxu0
    %v995 = vadd.f32 0.0, %v994
    %v996 = vand.u32 %v968, 4294901760
    %v997 = vsub.f32 %v968, %v996
    %v998 = vand.u32 %v997, 4294901760
    %v999 = vsub.f32 %v997, %v998
    %v1000 = vand.u32 %v999, 4294901760
    %1001 = vmatmul.f32.gmra.mxu0 %v1000
    %v1002 = vpop.f32.mrf.mxu0
    %v1003 = vadd.f32 0.0, %v1002
    %1004 = vdwg.mxu0
    %1005 = vmatpush.msra.mxu0 0.0
    %1006 = vmatpush.msra.mxu0 0.0
    %1007 = vmatpush.msra.mxu0 0.0
    %1008 = vmatpush.msra.mxu0 0.0
    %1009 = vmatpush.msra.mxu0 0.0
    %1010 = vmatpush.msra.mxu0 0.0
    %1011 = vmatpush.msra.mxu0 0.0
    %1012 = vmatpush.msra.mxu0 0.0
    %1013 = vmatpush.msra.mxu0 0.0
    %1014 = vmatpush.msra.mxu0 0.0
    %1015 = vmatpush.msra.mxu0 0.0
    %1016 = vmatpush.msra.mxu0 0.0
    %1017 = vmatpush.msra.mxu0 0.0
    %1018 = vmatpush.msra.mxu0 0.0
    %v1019 = vand.u32 %v36, 4294901760
    %v1020 = vsub.f32 %v36, %v1019
    %v1021 = vand.u32 %v1020, 4294901760
    %v1022 = vsub.f32 %v1020, %v1021
    %v1023 = vand.u32 %v1022, 4294901760
    %1024 = vmatpush.msra.mxu0 %v1023
    %v1025 = vand.u32 %v35, 4294901760
    %v1026 = vsub.f32 %v35, %v1025
    %v1027 = vand.u32 %v1026, 4294901760
    %v1028 = vsub.f32 %v1026, %v1027
    %v1029 = vand.u32 %v1028, 4294901760
    %1030 = vmatpush.msra.mxu0 %v1029
    %v1031 = vand.u32 %v965, 4294901760
    %1032 = vmatmul.f32.gmra.mxu0 %v1031
    %v1033 = vpop.f32.mrf.mxu0
    %v1034 = vadd.f32 %v995, %v1033
    %v1035 = vand.u32 %v968, 4294901760
    %1036 = vmatmul.f32.gmra.mxu0 %v1035
    %v1037 = vpop.f32.mrf.mxu0
    %v1038 = vadd.f32 %v1003, %v1037
    %1039 = vdwg.mxu0
    %1040 = vmatpush.msra.mxu0 0.0
    %1041 = vmatpush.msra.mxu0 0.0
    %1042 = vmatpush.msra.mxu0 0.0
    %1043 = vmatpush.msra.mxu0 0.0
    %1044 = vmatpush.msra.mxu0 0.0
    %1045 = vmatpush.msra.mxu0 0.0
    %1046 = vmatpush.msra.mxu0 0.0
    %1047 = vmatpush.msra.mxu0 0.0
    %1048 = vmatpush.msra.mxu0 0.0
    %1049 = vmatpush.msra.mxu0 0.0
    %1050 = vmatpush.msra.mxu0 0.0
    %1051 = vmatpush.msra.mxu0 0.0
    %1052 = vmatpush.msra.mxu0 0.0
    %1053 = vmatpush.msra.mxu0 0.0
    %v1054 = vand.u32 %v36, 4294901760
    %v1055 = vsub.f32 %v36, %v1054
    %1056 = vmatpush.msra.mxu0 %v1055
    %v1057 = vand.u32 %v35, 4294901760
    %v1058 = vsub.f32 %v35, %v1057
    %1059 = vmatpush.msra.mxu0 %v1058
    %v1060 = vand.u32 %v965, 4294901760
    %v1061 = vsub.f32 %v965, %v1060
    %1062 = vmatmul.f32.gmra.mxu0 %v1061
    %v1063 = vpop.f32.mrf.mxu0
    %v1064 = vadd.f32 %v1034, %v1063
    %v1065 = vand.u32 %v968, 4294901760
    %v1066 = vsub.f32 %v968, %v1065
    %1067 = vmatmul.f32.gmra.mxu0 %v1066
    %v1068 = vpop.f32.mrf.mxu0
    %v1069 = vadd.f32 %v1038, %v1068
    %1070 = vdwg.mxu0
    %1071 = vmatpush.msra.mxu0 0.0
    %1072 = vmatpush.msra.mxu0 0.0
    %1073 = vmatpush.msra.mxu0 0.0
    %1074 = vmatpush.msra.mxu0 0.0
    %1075 = vmatpush.msra.mxu0 0.0
    %1076 = vmatpush.msra.mxu0 0.0
    %1077 = vmatpush.msra.mxu0 0.0
    %1078 = vmatpush.msra.mxu0 0.0
    %1079 = vmatpush.msra.mxu0 0.0
    %1080 = vmatpush.msra.mxu0 0.0
    %1081 = vmatpush.msra.mxu0 0.0
    %1082 = vmatpush.msra.mxu0 0.0
    %1083 = vmatpush.msra.mxu0 0.0
    %1084 = vmatpush.msra.mxu0 0.0
    %v1085 = vand.u32 %v36, 4294901760
    %1086 = vmatpush.msra.mxu0 %v1085
    %v1087 = vand.u32 %v35, 4294901760
    %1088 = vmatpush.msra.mxu0 %v1087
    %v1089 = vand.u32 %v965, 4294901760
    %v1090 = vsub.f32 %v965, %v1089
    %v1091 = vand.u32 %v1090, 4294901760
    %1092 = vmatmul.f32.gmra.mxu0 %v1091
    %v1093 = vpop.f32.mrf.mxu0
    %v1094 = vadd.f32 %v1064, %v1093
    %v1095 = vand.u32 %v968, 4294901760
    %v1096 = vsub.f32 %v968, %v1095
    %v1097 = vand.u32 %v1096, 4294901760
    %1098 = vmatmul.f32.gmra.mxu0 %v1097
    %v1099 = vpop.f32.mrf.mxu0
    %v1100 = vadd.f32 %v1069, %v1099
    %1101 = vdwg.mxu0
    %1102 = vmatpush.msra.mxu0 0.0
    %1103 = vmatpush.msra.mxu0 0.0
    %1104 = vmatpush.msra.mxu0 0.0
    %1105 = vmatpush.msra.mxu0 0.0
    %1106 = vmatpush.msra.mxu0 0.0
    %1107 = vmatpush.msra.mxu0 0.0
    %1108 = vmatpush.msra.mxu0 0.0
    %1109 = vmatpush.msra.mxu0 0.0
    %1110 = vmatpush.msra.mxu0 0.0
    %1111 = vmatpush.msra.mxu0 0.0
    %1112 = vmatpush.msra.mxu0 0.0
    %1113 = vmatpush.msra.mxu0 0.0
    %1114 = vmatpush.msra.mxu0 0.0
    %1115 = vmatpush.msra.mxu0 0.0
    %v1116 = vand.u32 %v36, 4294901760
    %v1117 = vsub.f32 %v36, %v1116
    %v1118 = vand.u32 %v1117, 4294901760
    %1119 = vmatpush.msra.mxu0 %v1118
    %v1120 = vand.u32 %v35, 4294901760
    %v1121 = vsub.f32 %v35, %v1120
    %v1122 = vand.u32 %v1121, 4294901760
    %1123 = vmatpush.msra.mxu0 %v1122
    %v1124 = vand.u32 %v965, 4294901760
    %1125 = vmatmul.f32.gmra.mxu0 %v1124
    %v1126 = vpop.f32.mrf.mxu0
    %v1127 = vadd.f32 %v1094, %v1126
    %v1128 = vand.u32 %v968, 4294901760
    %1129 = vmatmul.f32.gmra.mxu0 %v1128
    %v1130 = vpop.f32.mrf.mxu0
    %v1131 = vadd.f32 %v1100, %v1130
    %1132 = vdwg.mxu0
    %1133 = vmatpush.msra.mxu0 0.0
    %1134 = vmatpush.msra.mxu0 0.0
    %1135 = vmatpush.msra.mxu0 0.0
    %1136 = vmatpush.msra.mxu0 0.0
    %1137 = vmatpush.msra.mxu0 0.0
    %1138 = vmatpush.msra.mxu0 0.0
    %1139 = vmatpush.msra.mxu0 0.0
    %1140 = vmatpush.msra.mxu0 0.0
    %1141 = vmatpush.msra.mxu0 0.0
    %1142 = vmatpush.msra.mxu0 0.0
    %1143 = vmatpush.msra.mxu0 0.0
    %1144 = vmatpush.msra.mxu0 0.0
    %1145 = vmatpush.msra.mxu0 0.0
    %1146 = vmatpush.msra.mxu0 0.0
    %v1147 = vand.u32 %v36, 4294901760
    %1148 = vmatpush.msra.mxu0 %v1147
    %v1149 = vand.u32 %v35, 4294901760
    %1150 = vmatpush.msra.mxu0 %v1149
    %v1151 = vand.u32 %v965, 4294901760
    %1152 = vmatmul.f32.gmra.mxu0 %v1151
    %v1153 = vpop.f32.mrf.mxu0
    %v1154 = vadd.f32 %v1127, %v1153
    %v1155 = vand.u32 %v968, 4294901760
    %1156 = vmatmul.f32.gmra.mxu0 %v1155
    %v1157 = vpop.f32.mrf.mxu0
    %v1158 = vadd.f32 %v1131, %v1157
    %1159 = vdwg.mxu0
    %1160 = vmatpush.msra.mxu0 0.0
    %1161 = vmatpush.msra.mxu0 0.0
    %1162 = vmatpush.msra.mxu0 0.0
    %1163 = vmatpush.msra.mxu0 0.0
    %1164 = vmatpush.msra.mxu0 0.0
    %1165 = vmatpush.msra.mxu0 0.0
    %1166 = vmatpush.msra.mxu0 0.0
    %1167 = vmatpush.msra.mxu0 0.0
    %1168 = vmatpush.msra.mxu0 0.0
    %1169 = vmatpush.msra.mxu0 0.0
    %1170 = vmatpush.msra.mxu0 0.0
    %1171 = vmatpush.msra.mxu0 0.0
    %1172 = vmatpush.msra.mxu0 0.0
    %1173 = vmatpush.msra.mxu0 0.0
    %v1174 = vand.u32 %v1158, 4294901760
    %1175 = vmatpush.msra.mxu0 %v1174
    %v1176 = vand.u32 %v1154, 4294901760
    %1177 = vmatpush.msra.mxu0 %v1176
    %v1178 = vand.u32 %v237, 4294901760
    %v1179 = vsub.f32 %v237, %v1178
    %v1180 = vand.u32 %v1179, 4294901760
    %v1181 = vsub.f32 %v1179, %v1180
    %v1182 = vand.u32 %v1181, 4294901760
    %1183 = vmatmul.f32.gmra.mxu0 %v1182
    %v1184 = vpop.f32.mrf.mxu0
    %v1185 = vadd.f32 0.0, %v1184
    %v1186 = vand.u32 %v240, 4294901760
    %v1187 = vsub.f32 %v240, %v1186
    %v1188 = vand.u32 %v1187, 4294901760
    %v1189 = vsub.f32 %v1187, %v1188
    %v1190 = vand.u32 %v1189, 4294901760
    %1191 = vmatmul.f32.gmra.mxu0 %v1190
    %v1192 = vpop.f32.mrf.mxu0
    %v1193 = vadd.f32 0.0, %v1192
    %v1194 = vand.u32 %v243, 4294901760
    %v1195 = vsub.f32 %v243, %v1194
    %v1196 = vand.u32 %v1195, 4294901760
    %v1197 = vsub.f32 %v1195, %v1196
    %v1198 = vand.u32 %v1197, 4294901760
    %1199 = vmatmul.f32.gmra.mxu0 %v1198
    %v1200 = vpop.f32.mrf.mxu0
    %v1201 = vadd.f32 0.0, %v1200
    %v1202 = vand.u32 %v246, 4294901760
    %v1203 = vsub.f32 %v246, %v1202
    %v1204 = vand.u32 %v1203, 4294901760
    %v1205 = vsub.f32 %v1203, %v1204
    %v1206 = vand.u32 %v1205, 4294901760
    %1207 = vmatmul.f32.gmra.mxu0 %v1206
    %v1208 = vpop.f32.mrf.mxu0
    %v1209 = vadd.f32 0.0, %v1208
    %1210 = vdwg.mxu0
    %1211 = vmatpush.msra.mxu0 0.0
    %1212 = vmatpush.msra.mxu0 0.0
    %1213 = vmatpush.msra.mxu0 0.0
    %1214 = vmatpush.msra.mxu0 0.0
    %1215 = vmatpush.msra.mxu0 0.0
    %1216 = vmatpush.msra.mxu0 0.0
    %1217 = vmatpush.msra.mxu0 0.0
    %1218 = vmatpush.msra.mxu0 0.0
    %1219 = vmatpush.msra.mxu0 0.0
    %1220 = vmatpush.msra.mxu0 0.0
    %1221 = vmatpush.msra.mxu0 0.0
    %1222 = vmatpush.msra.mxu0 0.0
    %1223 = vmatpush.msra.mxu0 0.0
    %1224 = vmatpush.msra.mxu0 0.0
    %v1225 = vand.u32 %v1158, 4294901760
    %v1226 = vsub.f32 %v1158, %v1225
    %v1227 = vand.u32 %v1226, 4294901760
    %v1228 = vsub.f32 %v1226, %v1227
    %v1229 = vand.u32 %v1228, 4294901760
    %1230 = vmatpush.msra.mxu0 %v1229
    %v1231 = vand.u32 %v1154, 4294901760
    %v1232 = vsub.f32 %v1154, %v1231
    %v1233 = vand.u32 %v1232, 4294901760
    %v1234 = vsub.f32 %v1232, %v1233
    %v1235 = vand.u32 %v1234, 4294901760
    %1236 = vmatpush.msra.mxu0 %v1235
    %v1237 = vand.u32 %v237, 4294901760
    %1238 = vmatmul.f32.gmra.mxu0 %v1237
    %v1239 = vpop.f32.mrf.mxu0
    %v1240 = vadd.f32 %v1185, %v1239
    %v1241 = vand.u32 %v240, 4294901760
    %1242 = vmatmul.f32.gmra.mxu0 %v1241
    %v1243 = vpop.f32.mrf.mxu0
    %v1244 = vadd.f32 %v1193, %v1243
    %v1245 = vand.u32 %v243, 4294901760
    %1246 = vmatmul.f32.gmra.mxu0 %v1245
    %v1247 = vpop.f32.mrf.mxu0
    %v1248 = vadd.f32 %v1201, %v1247
    %v1249 = vand.u32 %v246, 4294901760
    %1250 = vmatmul.f32.gmra.mxu0 %v1249
    %v1251 = vpop.f32.mrf.mxu0
    %v1252 = vadd.f32 %v1209, %v1251
    %1253 = vdwg.mxu0
    %1254 = vmatpush.msra.mxu0 0.0
    %1255 = vmatpush.msra.mxu0 0.0
    %1256 = vmatpush.msra.mxu0 0.0
    %1257 = vmatpush.msra.mxu0 0.0
    %1258 = vmatpush.msra.mxu0 0.0
    %1259 = vmatpush.msra.mxu0 0.0
    %1260 = vmatpush.msra.mxu0 0.0
    %1261 = vmatpush.msra.mxu0 0.0
    %1262 = vmatpush.msra.mxu0 0.0
    %1263 = vmatpush.msra.mxu0 0.0
    %1264 = vmatpush.msra.mxu0 0.0
    %1265 = vmatpush.msra.mxu0 0.0
    %1266 = vmatpush.msra.mxu0 0.0
    %1267 = vmatpush.msra.mxu0 0.0
    %v1268 = vand.u32 %v1158, 4294901760
    %v1269 = vsub.f32 %v1158, %v1268
    %1270 = vmatpush.msra.mxu0 %v1269
    %v1271 = vand.u32 %v1154, 4294901760
    %v1272 = vsub.f32 %v1154, %v1271
    %1273 = vmatpush.msra.mxu0 %v1272
    %v1274 = vand.u32 %v237, 4294901760
    %v1275 = vsub.f32 %v237, %v1274
    %1276 = vmatmul.f32.gmra.mxu0 %v1275
    %v1277 = vpop.f32.mrf.mxu0
    %v1278 = vadd.f32 %v1240, %v1277
    %v1279 = vand.u32 %v240, 4294901760
    %v1280 = vsub.f32 %v240, %v1279
    %1281 = vmatmul.f32.gmra.mxu0 %v1280
    %v1282 = vpop.f32.mrf.mxu0
    %v1283 = vadd.f32 %v1244, %v1282
    %v1284 = vand.u32 %v243, 4294901760
    %v1285 = vsub.f32 %v243, %v1284
    %1286 = vmatmul.f32.gmra.mxu0 %v1285
    %v1287 = vpop.f32.mrf.mxu0
    %v1288 = vadd.f32 %v1248, %v1287
    %v1289 = vand.u32 %v246, 4294901760
    %v1290 = vsub.f32 %v246, %v1289
    %1291 = vmatmul.f32.gmra.mxu0 %v1290
    %v1292 = vpop.f32.mrf.mxu0
    %v1293 = vadd.f32 %v1252, %v1292
    %1294 = vdwg.mxu0
    %1295 = vmatpush.msra.mxu0 0.0
    %1296 = vmatpush.msra.mxu0 0.0
    %1297 = vmatpush.msra.mxu0 0.0
    %1298 = vmatpush.msra.mxu0 0.0
    %1299 = vmatpush.msra.mxu0 0.0
    %1300 = vmatpush.msra.mxu0 0.0
    %1301 = vmatpush.msra.mxu0 0.0
    %1302 = vmatpush.msra.mxu0 0.0
    %1303 = vmatpush.msra.mxu0 0.0
    %1304 = vmatpush.msra.mxu0 0.0
    %1305 = vmatpush.msra.mxu0 0.0
    %1306 = vmatpush.msra.mxu0 0.0
    %1307 = vmatpush.msra.mxu0 0.0
    %1308 = vmatpush.msra.mxu0 0.0
    %v1309 = vand.u32 %v1158, 4294901760
    %1310 = vmatpush.msra.mxu0 %v1309
    %v1311 = vand.u32 %v1154, 4294901760
    %1312 = vmatpush.msra.mxu0 %v1311
    %v1313 = vand.u32 %v237, 4294901760
    %v1314 = vsub.f32 %v237, %v1313
    %v1315 = vand.u32 %v1314, 4294901760
    %1316 = vmatmul.f32.gmra.mxu0 %v1315
    %v1317 = vpop.f32.mrf.mxu0
    %v1318 = vadd.f32 %v1278, %v1317
    %v1319 = vand.u32 %v240, 4294901760
    %v1320 = vsub.f32 %v240, %v1319
    %v1321 = vand.u32 %v1320, 4294901760
    %1322 = vmatmul.f32.gmra.mxu0 %v1321
    %v1323 = vpop.f32.mrf.mxu0
    %v1324 = vadd.f32 %v1283, %v1323
    %v1325 = vand.u32 %v243, 4294901760
    %v1326 = vsub.f32 %v243, %v1325
    %v1327 = vand.u32 %v1326, 4294901760
    %1328 = vmatmul.f32.gmra.mxu0 %v1327
    %v1329 = vpop.f32.mrf.mxu0
    %v1330 = vadd.f32 %v1288, %v1329
    %v1331 = vand.u32 %v246, 4294901760
    %v1332 = vsub.f32 %v246, %v1331
    %v1333 = vand.u32 %v1332, 4294901760
    %1334 = vmatmul.f32.gmra.mxu0 %v1333
    %v1335 = vpop.f32.mrf.mxu0
    %v1336 = vadd.f32 %v1293, %v1335
    %1337 = vdwg.mxu0
    %1338 = vmatpush.msra.mxu0 0.0
    %1339 = vmatpush.msra.mxu0 0.0
    %1340 = vmatpush.msra.mxu0 0.0
    %1341 = vmatpush.msra.mxu0 0.0
    %1342 = vmatpush.msra.mxu0 0.0
    %1343 = vmatpush.msra.mxu0 0.0
    %1344 = vmatpush.msra.mxu0 0.0
    %1345 = vmatpush.msra.mxu0 0.0
    %1346 = vmatpush.msra.mxu0 0.0
    %1347 = vmatpush.msra.mxu0 0.0
    %1348 = vmatpush.msra.mxu0 0.0
    %1349 = vmatpush.msra.mxu0 0.0
    %1350 = vmatpush.msra.mxu0 0.0
    %1351 = vmatpush.msra.mxu0 0.0
    %v1352 = vand.u32 %v1158, 4294901760
    %v1353 = vsub.f32 %v1158, %v1352
    %v1354 = vand.u32 %v1353, 4294901760
    %1355 = vmatpush.msra.mxu0 %v1354
    %v1356 = vand.u32 %v1154, 4294901760
    %v1357 = vsub.f32 %v1154, %v1356
    %v1358 = vand.u32 %v1357, 4294901760
    %1359 = vmatpush.msra.mxu0 %v1358
    %v1360 = vand.u32 %v237, 4294901760
    %1361 = vmatmul.f32.gmra.mxu0 %v1360
    %v1362 = vpop.f32.mrf.mxu0
    %v1363 = vadd.f32 %v1318, %v1362
    %v1364 = vand.u32 %v240, 4294901760
    %1365 = vmatmul.f32.gmra.mxu0 %v1364
    %v1366 = vpop.f32.mrf.mxu0
    %v1367 = vadd.f32 %v1324, %v1366
    %v1368 = vand.u32 %v243, 4294901760
    %1369 = vmatmul.f32.gmra.mxu0 %v1368
    %v1370 = vpop.f32.mrf.mxu0
    %v1371 = vadd.f32 %v1330, %v1370
    %v1372 = vand.u32 %v246, 4294901760
    %1373 = vmatmul.f32.gmra.mxu0 %v1372
    %v1374 = vpop.f32.mrf.mxu0
    %v1375 = vadd.f32 %v1336, %v1374
    %1376 = vdwg.mxu0
    %1377 = vmatpush.msra.mxu0 0.0
    %1378 = vmatpush.msra.mxu0 0.0
    %1379 = vmatpush.msra.mxu0 0.0
    %1380 = vmatpush.msra.mxu0 0.0
    %1381 = vmatpush.msra.mxu0 0.0
    %1382 = vmatpush.msra.mxu0 0.0
    %1383 = vmatpush.msra.mxu0 0.0
    %1384 = vmatpush.msra.mxu0 0.0
    %1385 = vmatpush.msra.mxu0 0.0
    %1386 = vmatpush.msra.mxu0 0.0
    %1387 = vmatpush.msra.mxu0 0.0
    %1388 = vmatpush.msra.mxu0 0.0
    %1389 = vmatpush.msra.mxu0 0.0
    %1390 = vmatpush.msra.mxu0 0.0
    %v1391 = vand.u32 %v1158, 4294901760
    %1392 = vmatpush.msra.mxu0 %v1391
    %v1393 = vand.u32 %v1154, 4294901760
    %1394 = vmatpush.msra.mxu0 %v1393
    %v1395 = vand.u32 %v237, 4294901760
    %1396 = vmatmul.f32.gmra.mxu0 %v1395
    %v1397 = vpop.f32.mrf.mxu0
    %v1398 = vadd.f32 %v1363, %v1397
    %v1399 = vand.u32 %v240, 4294901760
    %1400 = vmatmul.f32.gmra.mxu0 %v1399
    %v1401 = vpop.f32.mrf.mxu0
    %v1402 = vadd.f32 %v1367, %v1401
    %v1403 = vand.u32 %v243, 4294901760
    %1404 = vmatmul.f32.gmra.mxu0 %v1403
    %v1405 = vpop.f32.mrf.mxu0
    %v1406 = vadd.f32 %v1371, %v1405
    %v1407 = vand.u32 %v246, 4294901760
    %1408 = vmatmul.f32.gmra.mxu0 %v1407
    %v1409 = vpop.f32.mrf.mxu0
    %v1410 = vadd.f32 %v1375, %v1409
    %1411 = vdwg.mxu0
    %s1412 = scalar_lea.vmem [#allocation5], 64
    %1413 = vst.msk [vmem:[%s1412] sm:$0xff] %vm500, %v1398
    %1414 = vst.msk [vmem:[%s1412 + $0x8] sm:$0xff] %vm500, %v1402
    %1415 = vst.msk [vmem:[%s1412 + $0x10] sm:$0xff] %vm500, %v1406
    %1416 = vst.msk [vmem:[%s1412 + $0x18] sm:$0xff] %vm500, %v1410
    // Predicated region
    $region18: #{tpu_custom_call.1} parent=1 // pred_check
      _
    $region19: #{tpu_custom_call.1} parent=1 // pred_check_branch
      %1418 = sbr.rel (0) target = $region21
    $region20: #{tpu_custom_call.1} parent=1 // pred_region
      %1420 = vsyncadd [#allocation4], 0
      %s1421 = sshll.u32 [#allocation5], 4
      %s1422 = int_to_ptr.vmem [resolvable:$true] %s1421
      %s1423 = sshll.u32 %s3, 4
      %s1424 = int_to_ptr.hbm [resolvable:$true] %s1423
      %1429 = dma.vmem_to_hbm [thread:$0]  %s1422, 1536, %s1424, [#allocation4], 128, 128, 8
    $region21: #{tpu_custom_call.1} parent=1 // pred_fallthru
      _
    // Predicated region
    $region22: #{tpu_custom_call.1} parent=1 // pred_check
      _
    $region23: #{tpu_custom_call.1} parent=1 // pred_check_branch
      %1431 = sbr.rel (0) target = $region25
    $region24: #{tpu_custom_call.1} parent=1 // pred_region
      %1433 = dma.done [#allocation4], 1536
    $region25: #{tpu_custom_call.1} parent=1 // pred_fallthru
      _
    %1434 = vsyncpa [#allocation3], 1
    %1435 = vsyncpa [#allocation4], 1

</llo_original>
